<compile_context>
chip_gen: v7x
topology: tpu7x:2x2x1
jax: 0.10.0
libtpu: 0.0.40
codegen_flags: <defaults>
</compile_context>

<pallas_src>
import jax
import jax.numpy as jnp
from jax.experimental import pallas as pl
from jax.experimental.pallas import tpu as pltpu

KSIZE = 7
PAD = KSIZE // 2


def _round_up(v, m):
    return -(-v // m) * m


def spatial_attention(x, weight, *, target_block_bytes=4 * 1024 * 1024):
    """x: (B, C, H, W); weight: (1, 2, 7, 7) -> (B, 1, H, W) in x.dtype."""
    B, C, H, W = x.shape
    HW = H * W
    itemsize = jnp.dtype(x.dtype).itemsize

    # Fold 1/C into the avg-channel taps: conv(mean, w0) == conv(sum, w0 / C).
    w2 = weight.astype(jnp.float32).reshape(2, KSIZE * KSIZE)
    w2 = w2 * jnp.array([[1.0 / C], [1.0]], dtype=jnp.float32)
    w_flat = w2.reshape(-1)                        # (98,), idx = ch*49 + kh*7 + kw

    # ---- channel-tile selection: multiple of 8 (or full C), prefer divisors of C,
    # ---- never jnp.pad the input. -------------------------------------------
    target_block_bytes = int(min(target_block_bytes, 16 * 1024 * 1024))
    tc_cap = max(1, target_block_bytes // max(1, HW * itemsize))
    if tc_cap >= C:
        tc = C
    else:
        tc = max(8, (tc_cap // 8) * 8)
        for cand in range(tc, max(8, tc // 2) - 1, -8):   # 8-multiple divisor near cap
            if C % cand == 0:
                tc = cand
                break
        tc = min(tc, C)
    nc = -(-C // tc)
    rem = C - (nc - 1) * tc                        # valid channels in the last tile
    ragged = rem != tc
    # TODO(synk): spatially tile the stream + finalize scratch for very large H*W
    # (v7x has only 64 MiB VMEM); current scratch assumes one H*W plane fits.

    def kernel(w_ref, x_ref, o_ref, sum_acc, max_acc, pad_ref):
        c = pl.program_id(1)

        # ---- per-batch init (runs on every core -> safe under megacore) -----
        @pl.when(c == 0)
        def _init():
            sum_acc[...] = jnp.zeros(sum_acc.shape, jnp.float32)
            max_acc[...] = jnp.full(max_acc.shape, -jnp.inf, jnp.float32)
            pad_ref[...] = jnp.zeros(pad_ref.shape, jnp.float32)     # zero halo

        # ---- streamed, lane-dense fused sum + max over channel tiles --------
        def accumulate(mask_tail):
            xt = x_ref[0].astype(jnp.float32)                        # (tc, HW)
            if mask_tail:
                ids = jax.lax.broadcasted_iota(jnp.int32, (tc, 1), 0)
                valid = ids < rem
                x_sum = jnp.where(valid, xt, 0.0)
                x_max = jnp.where(valid, xt, -jnp.inf)
            else:
                x_sum = x_max = xt
            sum_acc[...] = sum_acc[...] + jnp.sum(x_sum, axis=0, keepdims=True)
            max_acc[...] = jnp.maximum(
                max_acc[...], jnp.max(x_max, axis=0, keepdims=True))

        if ragged:
            @pl.when(c < nc - 1)
            def _interior():
                accumulate(False)

            @pl.when(c == nc - 1)
            def _tail():
                accumulate(True)
        else:
            accumulate(False)

        # ---- finalize: 7x7 conv over [avg, max] + sigmoid (once per batch) ---
        @pl.when(c == nc - 1)
        def _finalize():
            # Row-wise unflatten (H*W,) -> (H, W) into the padded planes; this is
            # the single once-per-batch relayout (plain slices/stores only).
            for i in range(H):
                pad_ref[0, PAD + i, PAD:PAD + W] = sum_acc[0, i * W:(i + 1) * W]
                pad_ref[1, PAD + i, PAD:PAD + W] = max_acc[0, i * W:(i + 1) * W]

            acc = None
            for ch in range(2):
                for kh in range(KSIZE):
                    # One sublane-offset row block per (ch, kh), reused across its
                    # 7 kw taps (lane-offset selects) -> 14 VMEM reads, not 98.
                    rows = pad_ref[ch, kh:kh + H, :]                 # (H, W+6)
                    for kw in range(KSIZE):
                        wgt = w_ref[ch * KSIZE * KSIZE + kh * KSIZE + kw]
                        tap = wgt * rows[:, kw:kw + W]
                        acc = tap if acc is None else acc + tap
            o_ref[0, 0, :, :] = jax.nn.sigmoid(acc).astype(o_ref.dtype)

    # VMEM budget: double-buffered x tile + out tile + scratch (+ margin), capped
    # at 48 MiB so it is safe on v7x (64 MiB physical) as well as v5e/v6e.
    pad_bytes = 2 * _round_up(H + 2 * PAD, 8) * _round_up(W + 2 * PAD, 128) * 4
    acc_bytes = 2 * 8 * _round_up(HW, 128) * 4
    vmem_needed = 2 * tc * HW * itemsize + 2 * HW * itemsize + pad_bytes + acc_bytes
    vmem_limit = int(min(max(32 * 2 ** 20, vmem_needed + 8 * 2 ** 20), 48 * 2 ** 20))

    return pl.pallas_call(
        kernel,
        out_shape=jax.ShapeDtypeStruct((B, 1, H, W), x.dtype),
        grid=(B, nc),
        in_specs=[
            pl.BlockSpec(memory_space=pltpu.MemorySpace.SMEM),       # conv weights
            pl.BlockSpec((1, tc, HW), lambda b, c: (b, c, 0)),       # x channel tile
        ],
        out_specs=pl.BlockSpec((1, 1, H, W), lambda b, c: (b, 0, 0, 0)),
        scratch_shapes=[
            pltpu.VMEM((1, HW), jnp.float32),                        # running sum
            pltpu.VMEM((1, HW), jnp.float32),                        # running max
            pltpu.VMEM((2, H + 2 * PAD, W + 2 * PAD), jnp.float32),  # padded planes
        ],
        compiler_params=pltpu.CompilerParams(
            dimension_semantics=("parallel", "arbitrary"),
            vmem_limit_bytes=vmem_limit,
        ),
    )(w_flat, x.reshape(B, C, HW))


def spatial_attention_ref(x, weight):
    avg = jnp.mean(x, axis=1, keepdims=True)
    mx = jnp.max(x, axis=1, keepdims=True)
    cat = jnp.concatenate([avg, mx], axis=1)
    out = jax.lax.conv_general_dilated(
        cat, weight.astype(cat.dtype), window_strides=(1, 1),
        padding=[(PAD, PAD), (PAD, PAD)],
        dimension_numbers=("NCHW", "OIHW", "NCHW"),
        precision=jax.lax.Precision.HIGHEST)
    return jax.nn.sigmoid(out)


if __name__ == "__main__":
    key = jax.random.PRNGKey(0)
    kx, kw, kx2 = jax.random.split(key, 3)

    # Test 1: nominal small shape (single channel tile, no masking).
    B, C, H, W = 2, 4, 16, 16
    x = jax.random.normal(kx, (B, C, H, W), dtype=jnp.float32)
    weight = jax.random.normal(kw, (1, 2, KSIZE, KSIZE), dtype=jnp.float32) * 0.1

    out = jax.block_until_ready(spatial_attention(x, weight))
    ref = spatial_attention_ref(x, weight)
    assert out.shape == (B, 1, H, W), out.shape
    err = float(jnp.max(jnp.abs(out - ref)))
    assert err < 5e-5, err

    # Test 2: multi-tile channel reduction with a ragged (masked) last tile.
    C2 = 10
    x2 = jax.random.normal(kx2, (B, C2, H, W), dtype=jnp.float32)
    out2 = jax.block_until_ready(
        spatial_attention(x2, weight, target_block_bytes=8 * H * W * 4))  # tc=8 -> 2 tiles
    ref2 = spatial_attention_ref(x2, weight)
    assert out2.shape == (B, 1, H, W), out2.shape
    err2 = float(jnp.max(jnp.abs(out2 - ref2)))
    assert err2 < 5e-5, err2

    print("KERNEL_OK")
</pallas_src>

<mosaic_0001>
module attributes {stable_mosaic.version = 11 : i64} {
  func.func @kernel(%arg0: i32, %arg1: i32, %arg2: memref<98xf32, #tpu.memory_space<smem>>, %arg3: memref<1x4x256xf32, #tpu.memory_space<vmem>>, %arg4: memref<1x1x16x16xf32, #tpu.memory_space<vmem>>, %arg5: memref<1x256xf32, #tpu.memory_space<vmem>>, %arg6: memref<1x256xf32, #tpu.memory_space<vmem>>, %arg7: memref<2x22x22xf32, #tpu.memory_space<vmem>>) attributes {dimension_semantics = [#tpu.dimension_semantics<parallel>, #tpu.dimension_semantics<arbitrary>], iteration_bounds = array<i64: 2, 1>, scalar_prefetch = 0 : i64, scratch_operands = 3 : i64, tpu.core_type = #tpu.core_type<tc>, window_params = [{transform_indices = @transform_0, window_bounds = array<i64: 98>}, {transform_indices = @transform_1, window_bounds = array<i64: 1, 4, 256>}, {transform_indices = @transform_2, window_bounds = array<i64: 1, 1, 16, 16>}]} {
    %c0_i32 = arith.constant 0 : i32
    %0 = arith.cmpi eq, %arg1, %c0_i32 : i32
    %1 = arith.extui %0 : i1 to i32
    %c0_i32_0 = arith.constant 0 : i32
    %2 = arith.cmpi ne, %1, %c0_i32_0 : i32
    scf.if %2 {
      %cst_14 = arith.constant 0.000000e+00 : f32
      %18 = vector.broadcast %cst_14 : f32 to vector<1x256xf32>
      %c0_15 = arith.constant 0 : index
      %c0_16 = arith.constant 0 : index
      %19 = vector.load %arg5[%c0_15, %c0_16] : memref<1x256xf32, #tpu.memory_space<vmem>>, vector<1x256xf32>
      tpu.vector_store %arg5[%c0_15, %c0_16], %18 {strides = array<i32>} : memref<1x256xf32, #tpu.memory_space<vmem>>, vector<1x256xf32>,
      %cst_17 = arith.constant 0xFF800000 : f32
      %20 = vector.broadcast %cst_17 : f32 to vector<1x256xf32>
      %c0_18 = arith.constant 0 : index
      %c0_19 = arith.constant 0 : index
      %21 = vector.load %arg6[%c0_18, %c0_19] : memref<1x256xf32, #tpu.memory_space<vmem>>, vector<1x256xf32>
      tpu.vector_store %arg6[%c0_18, %c0_19], %20 {strides = array<i32>} : memref<1x256xf32, #tpu.memory_space<vmem>>, vector<1x256xf32>,
      %cst_20 = arith.constant 0.000000e+00 : f32
      %22 = vector.broadcast %cst_20 : f32 to vector<2x22x22xf32>
      %c0_21 = arith.constant 0 : index
      %c0_22 = arith.constant 0 : index
      %c0_23 = arith.constant 0 : index
      %23 = vector.load %arg7[%c0_21, %c0_22, %c0_23] : memref<2x22x22xf32, #tpu.memory_space<vmem>>, vector<2x22x22xf32>
      tpu.vector_store %arg7[%c0_21, %c0_22, %c0_23], %22 {strides = array<i32>} : memref<2x22x22xf32, #tpu.memory_space<vmem>>, vector<2x22x22xf32>,
    } else {
    }
    %c0 = arith.constant 0 : index
    %c0_1 = arith.constant 0 : index
    %c0_2 = arith.constant 0 : index
    %3 = vector.load %arg3[%c0, %c0_1, %c0_2] : memref<1x4x256xf32, #tpu.memory_space<vmem>>, vector<1x4x256xf32>
    %4 = vector.shape_cast %3 : vector<1x4x256xf32> to vector<4x256xf32>
    %c0_3 = arith.constant 0 : index
    %c0_4 = arith.constant 0 : index
    %5 = vector.load %arg5[%c0_3, %c0_4] : memref<1x256xf32, #tpu.memory_space<vmem>>, vector<1x256xf32>
    %cst = arith.constant dense<0.000000e+00> : vector<256xf32>
    %6 = vector.multi_reduction <add>, %4, %cst [0] : vector<4x256xf32> to vector<256xf32>
    %7 = vector.shape_cast %6 : vector<256xf32> to vector<1x256xf32>
    %8 = arith.addf %5, %7 : vector<1x256xf32>
    %c0_5 = arith.constant 0 : index
    %c0_6 = arith.constant 0 : index
    %9 = vector.load %arg5[%c0_5, %c0_6] : memref<1x256xf32, #tpu.memory_space<vmem>>, vector<1x256xf32>
    tpu.vector_store %arg5[%c0_5, %c0_6], %8 {strides = array<i32>} : memref<1x256xf32, #tpu.memory_space<vmem>>, vector<1x256xf32>,
    %c0_7 = arith.constant 0 : index
    %c0_8 = arith.constant 0 : index
    %10 = vector.load %arg6[%c0_7, %c0_8] : memref<1x256xf32, #tpu.memory_space<vmem>>, vector<1x256xf32>
    %cst_9 = arith.constant dense<0xFF800000> : vector<256xf32>
    %11 = vector.multi_reduction <maximumf>, %4, %cst_9 [0] : vector<4x256xf32> to vector<256xf32>
    %12 = vector.shape_cast %11 : vector<256xf32> to vector<1x256xf32>
    %13 = arith.maximumf %10, %12 : vector<1x256xf32>
    %c0_10 = arith.constant 0 : index
    %c0_11 = arith.constant 0 : index
    %14 = vector.load %arg6[%c0_10, %c0_11] : memref<1x256xf32, #tpu.memory_space<vmem>>, vector<1x256xf32>
    tpu.vector_store %arg6[%c0_10, %c0_11], %13 {strides = array<i32>} : memref<1x256xf32, #tpu.memory_space<vmem>>, vector<1x256xf32>,
    %c0_i32_12 = arith.constant 0 : i32
    %15 = arith.cmpi eq, %arg1, %c0_i32_12 : i32
    %16 = arith.extui %15 : i1 to i32
    %c0_i32_13 = arith.constant 0 : i32
    %17 = arith.cmpi ne, %16, %c0_i32_13 : i32
    scf.if %17 {
      %c0_14 = arith.constant 0 : index
      %c0_15 = arith.constant 0 : index
      %18 = vector.load %arg5[%c0_14, %c0_15] : memref<1x256xf32, #tpu.memory_space<vmem>>, vector<1x16xf32>
      %19 = vector.shape_cast %18 : vector<1x16xf32> to vector<16xf32>
      %c0_16 = arith.constant 0 : index
      %c3 = arith.constant 3 : index
      %c3_17 = arith.constant 3 : index
      %20 = vector.load %arg7[%c0_16, %c3, %c3_17] : memref<2x22x22xf32, #tpu.memory_space<vmem>>, vector<1x1x16xf32>
      %21 = vector.shape_cast %20 : vector<1x1x16xf32> to vector<16xf32>
      %22 = vector.shape_cast %19 : vector<16xf32> to vector<1x1x16xf32>
      tpu.vector_store %arg7[%c0_16, %c3, %c3_17], %22 {strides = array<i32>} : memref<2x22x22xf32, #tpu.memory_space<vmem>>, vector<1x1x16xf32>,
      %c0_18 = arith.constant 0 : index
      %c0_19 = arith.constant 0 : index
      %23 = vector.load %arg6[%c0_18, %c0_19] : memref<1x256xf32, #tpu.memory_space<vmem>>, vector<1x16xf32>
      %24 = vector.shape_cast %23 : vector<1x16xf32> to vector<16xf32>
      %c1 = arith.constant 1 : index
      %c3_20 = arith.constant 3 : index
      %c3_21 = arith.constant 3 : index
      %25 = vector.load %arg7[%c1, %c3_20, %c3_21] : memref<2x22x22xf32, #tpu.memory_space<vmem>>, vector<1x1x16xf32>
      %26 = vector.shape_cast %25 : vector<1x1x16xf32> to vector<16xf32>
      %27 = vector.shape_cast %24 : vector<16xf32> to vector<1x1x16xf32>
      tpu.vector_store %arg7[%c1, %c3_20, %c3_21], %27 {strides = array<i32>} : memref<2x22x22xf32, #tpu.memory_space<vmem>>, vector<1x1x16xf32>,
      %c0_22 = arith.constant 0 : index
      %c16 = arith.constant 16 : index
      %28 = vector.load %arg5[%c0_22, %c16] : memref<1x256xf32, #tpu.memory_space<vmem>>, vector<1x16xf32>
      %29 = vector.shape_cast %28 : vector<1x16xf32> to vector<16xf32>
      %c0_23 = arith.constant 0 : index
      %c4 = arith.constant 4 : index
      %c3_24 = arith.constant 3 : index
      %30 = vector.load %arg7[%c0_23, %c4, %c3_24] : memref<2x22x22xf32, #tpu.memory_space<vmem>>, vector<1x1x16xf32>
      %31 = vector.shape_cast %30 : vector<1x1x16xf32> to vector<16xf32>
      %32 = vector.shape_cast %29 : vector<16xf32> to vector<1x1x16xf32>
      tpu.vector_store %arg7[%c0_23, %c4, %c3_24], %32 {strides = array<i32>} : memref<2x22x22xf32, #tpu.memory_space<vmem>>, vector<1x1x16xf32>,
      %c0_25 = arith.constant 0 : index
      %c16_26 = arith.constant 16 : index
      %33 = vector.load %arg6[%c0_25, %c16_26] : memref<1x256xf32, #tpu.memory_space<vmem>>, vector<1x16xf32>
      %34 = vector.shape_cast %33 : vector<1x16xf32> to vector<16xf32>
      %c1_27 = arith.constant 1 : index
      %c4_28 = arith.constant 4 : index
      %c3_29 = arith.constant 3 : index
      %35 = vector.load %arg7[%c1_27, %c4_28, %c3_29] : memref<2x22x22xf32, #tpu.memory_space<vmem>>, vector<1x1x16xf32>
      %36 = vector.shape_cast %35 : vector<1x1x16xf32> to vector<16xf32>
      %37 = vector.shape_cast %34 : vector<16xf32> to vector<1x1x16xf32>
      tpu.vector_store %arg7[%c1_27, %c4_28, %c3_29], %37 {strides = array<i32>} : memref<2x22x22xf32, #tpu.memory_space<vmem>>, vector<1x1x16xf32>,
      %c0_30 = arith.constant 0 : index
      %c32 = arith.constant 32 : index
      %38 = vector.load %arg5[%c0_30, %c32] : memref<1x256xf32, #tpu.memory_space<vmem>>, vector<1x16xf32>
      %39 = vector.shape_cast %38 : vector<1x16xf32> to vector<16xf32>
      %c0_31 = arith.constant 0 : index
      %c5 = arith.constant 5 : index
      %c3_32 = arith.constant 3 : index
      %40 = vector.load %arg7[%c0_31, %c5, %c3_32] : memref<2x22x22xf32, #tpu.memory_space<vmem>>, vector<1x1x16xf32>
      %41 = vector.shape_cast %40 : vector<1x1x16xf32> to vector<16xf32>
      %42 = vector.shape_cast %39 : vector<16xf32> to vector<1x1x16xf32>
      tpu.vector_store %arg7[%c0_31, %c5, %c3_32], %42 {strides = array<i32>} : memref<2x22x22xf32, #tpu.memory_space<vmem>>, vector<1x1x16xf32>,
      %c0_33 = arith.constant 0 : index
      %c32_34 = arith.constant 32 : index
      %43 = vector.load %arg6[%c0_33, %c32_34] : memref<1x256xf32, #tpu.memory_space<vmem>>, vector<1x16xf32>
      %44 = vector.shape_cast %43 : vector<1x16xf32> to vector<16xf32>
      %c1_35 = arith.constant 1 : index
      %c5_36 = arith.constant 5 : index
      %c3_37 = arith.constant 3 : index
      %45 = vector.load %arg7[%c1_35, %c5_36, %c3_37] : memref<2x22x22xf32, #tpu.memory_space<vmem>>, vector<1x1x16xf32>
      %46 = vector.shape_cast %45 : vector<1x1x16xf32> to vector<16xf32>
      %47 = vector.shape_cast %44 : vector<16xf32> to vector<1x1x16xf32>
      tpu.vector_store %arg7[%c1_35, %c5_36, %c3_37], %47 {strides = array<i32>} : memref<2x22x22xf32, #tpu.memory_space<vmem>>, vector<1x1x16xf32>,
      %c0_38 = arith.constant 0 : index
      %c48 = arith.constant 48 : index
      %48 = vector.load %arg5[%c0_38, %c48] : memref<1x256xf32, #tpu.memory_space<vmem>>, vector<1x16xf32>
      %49 = vector.shape_cast %48 : vector<1x16xf32> to vector<16xf32>
      %c0_39 = arith.constant 0 : index
      %c6 = arith.constant 6 : index
      %c3_40 = arith.constant 3 : index
      %50 = vector.load %arg7[%c0_39, %c6, %c3_40] : memref<2x22x22xf32, #tpu.memory_space<vmem>>, vector<1x1x16xf32>
      %51 = vector.shape_cast %50 : vector<1x1x16xf32> to vector<16xf32>
      %52 = vector.shape_cast %49 : vector<16xf32> to vector<1x1x16xf32>
      tpu.vector_store %arg7[%c0_39, %c6, %c3_40], %52 {strides = array<i32>} : memref<2x22x22xf32, #tpu.memory_space<vmem>>, vector<1x1x16xf32>,
      %c0_41 = arith.constant 0 : index
      %c48_42 = arith.constant 48 : index
      %53 = vector.load %arg6[%c0_41, %c48_42] : memref<1x256xf32, #tpu.memory_space<vmem>>, vector<1x16xf32>
      %54 = vector.shape_cast %53 : vector<1x16xf32> to vector<16xf32>
      %c1_43 = arith.constant 1 : index
      %c6_44 = arith.constant 6 : index
      %c3_45 = arith.constant 3 : index
      %55 = vector.load %arg7[%c1_43, %c6_44, %c3_45] : memref<2x22x22xf32, #tpu.memory_space<vmem>>, vector<1x1x16xf32>
      %56 = vector.shape_cast %55 : vector<1x1x16xf32> to vector<16xf32>
      %57 = vector.shape_cast %54 : vector<16xf32> to vector<1x1x16xf32>
      tpu.vector_store %arg7[%c1_43, %c6_44, %c3_45], %57 {strides = array<i32>} : memref<2x22x22xf32, #tpu.memory_space<vmem>>, vector<1x1x16xf32>,
      %c0_46 = arith.constant 0 : index
      %c64 = arith.constant 64 : index
      %58 = vector.load %arg5[%c0_46, %c64] : memref<1x256xf32, #tpu.memory_space<vmem>>, vector<1x16xf32>
      %59 = vector.shape_cast %58 : vector<1x16xf32> to vector<16xf32>
      %c0_47 = arith.constant 0 : index
      %c7 = arith.constant 7 : index
      %c3_48 = arith.constant 3 : index
      %60 = vector.load %arg7[%c0_47, %c7, %c3_48] : memref<2x22x22xf32, #tpu.memory_space<vmem>>, vector<1x1x16xf32>
      %61 = vector.shape_cast %60 : vector<1x1x16xf32> to vector<16xf32>
      %62 = vector.shape_cast %59 : vector<16xf32> to vector<1x1x16xf32>
      tpu.vector_store %arg7[%c0_47, %c7, %c3_48], %62 {strides = array<i32>} : memref<2x22x22xf32, #tpu.memory_space<vmem>>, vector<1x1x16xf32>,
      %c0_49 = arith.constant 0 : index
      %c64_50 = arith.constant 64 : index
      %63 = vector.load %arg6[%c0_49, %c64_50] : memref<1x256xf32, #tpu.memory_space<vmem>>, vector<1x16xf32>
      %64 = vector.shape_cast %63 : vector<1x16xf32> to vector<16xf32>
      %c1_51 = arith.constant 1 : index
      %c7_52 = arith.constant 7 : index
      %c3_53 = arith.constant 3 : index
      %65 = vector.load %arg7[%c1_51, %c7_52, %c3_53] : memref<2x22x22xf32, #tpu.memory_space<vmem>>, vector<1x1x16xf32>
      %66 = vector.shape_cast %65 : vector<1x1x16xf32> to vector<16xf32>
      %67 = vector.shape_cast %64 : vector<16xf32> to vector<1x1x16xf32>
      tpu.vector_store %arg7[%c1_51, %c7_52, %c3_53], %67 {strides = array<i32>} : memref<2x22x22xf32, #tpu.memory_space<vmem>>, vector<1x1x16xf32>,
      %c0_54 = arith.constant 0 : index
      %c80 = arith.constant 80 : index
      %68 = vector.load %arg5[%c0_54, %c80] : memref<1x256xf32, #tpu.memory_space<vmem>>, vector<1x16xf32>
      %69 = vector.shape_cast %68 : vector<1x16xf32> to vector<16xf32>
      %c0_55 = arith.constant 0 : index
      %c8 = arith.constant 8 : index
      %c3_56 = arith.constant 3 : index
      %70 = vector.load %arg7[%c0_55, %c8, %c3_56] : memref<2x22x22xf32, #tpu.memory_space<vmem>>, vector<1x1x16xf32>
      %71 = vector.shape_cast %70 : vector<1x1x16xf32> to vector<16xf32>
      %72 = vector.shape_cast %69 : vector<16xf32> to vector<1x1x16xf32>
      tpu.vector_store %arg7[%c0_55, %c8, %c3_56], %72 {strides = array<i32>} : memref<2x22x22xf32, #tpu.memory_space<vmem>>, vector<1x1x16xf32>,
      %c0_57 = arith.constant 0 : index
      %c80_58 = arith.constant 80 : index
      %73 = vector.load %arg6[%c0_57, %c80_58] : memref<1x256xf32, #tpu.memory_space<vmem>>, vector<1x16xf32>
      %74 = vector.shape_cast %73 : vector<1x16xf32> to vector<16xf32>
      %c1_59 = arith.constant 1 : index
      %c8_60 = arith.constant 8 : index
      %c3_61 = arith.constant 3 : index
      %75 = vector.load %arg7[%c1_59, %c8_60, %c3_61] : memref<2x22x22xf32, #tpu.memory_space<vmem>>, vector<1x1x16xf32>
      %76 = vector.shape_cast %75 : vector<1x1x16xf32> to vector<16xf32>
      %77 = vector.shape_cast %74 : vector<16xf32> to vector<1x1x16xf32>
      tpu.vector_store %arg7[%c1_59, %c8_60, %c3_61], %77 {strides = array<i32>} : memref<2x22x22xf32, #tpu.memory_space<vmem>>, vector<1x1x16xf32>,
      %c0_62 = arith.constant 0 : index
      %c96 = arith.constant 96 : index
      %78 = vector.load %arg5[%c0_62, %c96] : memref<1x256xf32, #tpu.memory_space<vmem>>, vector<1x16xf32>
      %79 = vector.shape_cast %78 : vector<1x16xf32> to vector<16xf32>
      %c0_63 = arith.constant 0 : index
      %c9 = arith.constant 9 : index
      %c3_64 = arith.constant 3 : index
      %80 = vector.load %arg7[%c0_63, %c9, %c3_64] : memref<2x22x22xf32, #tpu.memory_space<vmem>>, vector<1x1x16xf32>
      %81 = vector.shape_cast %80 : vector<1x1x16xf32> to vector<16xf32>
      %82 = vector.shape_cast %79 : vector<16xf32> to vector<1x1x16xf32>
      tpu.vector_store %arg7[%c0_63, %c9, %c3_64], %82 {strides = array<i32>} : memref<2x22x22xf32, #tpu.memory_space<vmem>>, vector<1x1x16xf32>,
      %c0_65 = arith.constant 0 : index
      %c96_66 = arith.constant 96 : index
      %83 = vector.load %arg6[%c0_65, %c96_66] : memref<1x256xf32, #tpu.memory_space<vmem>>, vector<1x16xf32>
      %84 = vector.shape_cast %83 : vector<1x16xf32> to vector<16xf32>
      %c1_67 = arith.constant 1 : index
      %c9_68 = arith.constant 9 : index
      %c3_69 = arith.constant 3 : index
      %85 = vector.load %arg7[%c1_67, %c9_68, %c3_69] : memref<2x22x22xf32, #tpu.memory_space<vmem>>, vector<1x1x16xf32>
      %86 = vector.shape_cast %85 : vector<1x1x16xf32> to vector<16xf32>
      %87 = vector.shape_cast %84 : vector<16xf32> to vector<1x1x16xf32>
      tpu.vector_store %arg7[%c1_67, %c9_68, %c3_69], %87 {strides = array<i32>} : memref<2x22x22xf32, #tpu.memory_space<vmem>>, vector<1x1x16xf32>,
      %c0_70 = arith.constant 0 : index
      %c112 = arith.constant 112 : index
      %88 = vector.load %arg5[%c0_70, %c112] : memref<1x256xf32, #tpu.memory_space<vmem>>, vector<1x16xf32>
      %89 = vector.shape_cast %88 : vector<1x16xf32> to vector<16xf32>
      %c0_71 = arith.constant 0 : index
      %c10 = arith.constant 10 : index
      %c3_72 = arith.constant 3 : index
      %90 = vector.load %arg7[%c0_71, %c10, %c3_72] : memref<2x22x22xf32, #tpu.memory_space<vmem>>, vector<1x1x16xf32>
      %91 = vector.shape_cast %90 : vector<1x1x16xf32> to vector<16xf32>
      %92 = vector.shape_cast %89 : vector<16xf32> to vector<1x1x16xf32>
      tpu.vector_store %arg7[%c0_71, %c10, %c3_72], %92 {strides = array<i32>} : memref<2x22x22xf32, #tpu.memory_space<vmem>>, vector<1x1x16xf32>,
      %c0_73 = arith.constant 0 : index
      %c112_74 = arith.constant 112 : index
      %93 = vector.load %arg6[%c0_73, %c112_74] : memref<1x256xf32, #tpu.memory_space<vmem>>, vector<1x16xf32>
      %94 = vector.shape_cast %93 : vector<1x16xf32> to vector<16xf32>
      %c1_75 = arith.constant 1 : index
      %c10_76 = arith.constant 10 : index
      %c3_77 = arith.constant 3 : index
      %95 = vector.load %arg7[%c1_75, %c10_76, %c3_77] : memref<2x22x22xf32, #tpu.memory_space<vmem>>, vector<1x1x16xf32>
      %96 = vector.shape_cast %95 : vector<1x1x16xf32> to vector<16xf32>
      %97 = vector.shape_cast %94 : vector<16xf32> to vector<1x1x16xf32>
      tpu.vector_store %arg7[%c1_75, %c10_76, %c3_77], %97 {strides = array<i32>} : memref<2x22x22xf32, #tpu.memory_space<vmem>>, vector<1x1x16xf32>,
      %c0_78 = arith.constant 0 : index
      %c128 = arith.constant 128 : index
      %98 = vector.load %arg5[%c0_78, %c128] : memref<1x256xf32, #tpu.memory_space<vmem>>, vector<1x16xf32>
      %99 = vector.shape_cast %98 : vector<1x16xf32> to vector<16xf32>
      %c0_79 = arith.constant 0 : index
      %c11 = arith.constant 11 : index
      %c3_80 = arith.constant 3 : index
      %100 = vector.load %arg7[%c0_79, %c11, %c3_80] : memref<2x22x22xf32, #tpu.memory_space<vmem>>, vector<1x1x16xf32>
      %101 = vector.shape_cast %100 : vector<1x1x16xf32> to vector<16xf32>
      %102 = vector.shape_cast %99 : vector<16xf32> to vector<1x1x16xf32>
      tpu.vector_store %arg7[%c0_79, %c11, %c3_80], %102 {strides = array<i32>} : memref<2x22x22xf32, #tpu.memory_space<vmem>>, vector<1x1x16xf32>,
      %c0_81 = arith.constant 0 : index
      %c128_82 = arith.constant 128 : index
      %103 = vector.load %arg6[%c0_81, %c128_82] : memref<1x256xf32, #tpu.memory_space<vmem>>, vector<1x16xf32>
      %104 = vector.shape_cast %103 : vector<1x16xf32> to vector<16xf32>
      %c1_83 = arith.constant 1 : index
      %c11_84 = arith.constant 11 : index
      %c3_85 = arith.constant 3 : index
      %105 = vector.load %arg7[%c1_83, %c11_84, %c3_85] : memref<2x22x22xf32, #tpu.memory_space<vmem>>, vector<1x1x16xf32>
      %106 = vector.shape_cast %105 : vector<1x1x16xf32> to vector<16xf32>
      %107 = vector.shape_cast %104 : vector<16xf32> to vector<1x1x16xf32>
      tpu.vector_store %arg7[%c1_83, %c11_84, %c3_85], %107 {strides = array<i32>} : memref<2x22x22xf32, #tpu.memory_space<vmem>>, vector<1x1x16xf32>,
      %c0_86 = arith.constant 0 : index
      %c144 = arith.constant 144 : index
      %108 = vector.load %arg5[%c0_86, %c144] : memref<1x256xf32, #tpu.memory_space<vmem>>, vector<1x16xf32>
      %109 = vector.shape_cast %108 : vector<1x16xf32> to vector<16xf32>
      %c0_87 = arith.constant 0 : index
      %c12 = arith.constant 12 : index
      %c3_88 = arith.constant 3 : index
      %110 = vector.load %arg7[%c0_87, %c12, %c3_88] : memref<2x22x22xf32, #tpu.memory_space<vmem>>, vector<1x1x16xf32>
      %111 = vector.shape_cast %110 : vector<1x1x16xf32> to vector<16xf32>
      %112 = vector.shape_cast %109 : vector<16xf32> to vector<1x1x16xf32>
      tpu.vector_store %arg7[%c0_87, %c12, %c3_88], %112 {strides = array<i32>} : memref<2x22x22xf32, #tpu.memory_space<vmem>>, vector<1x1x16xf32>,
      %c0_89 = arith.constant 0 : index
      %c144_90 = arith.constant 144 : index
      %113 = vector.load %arg6[%c0_89, %c144_90] : memref<1x256xf32, #tpu.memory_space<vmem>>, vector<1x16xf32>
      %114 = vector.shape_cast %113 : vector<1x16xf32> to vector<16xf32>
      %c1_91 = arith.constant 1 : index
      %c12_92 = arith.constant 12 : index
      %c3_93 = arith.constant 3 : index
      %115 = vector.load %arg7[%c1_91, %c12_92, %c3_93] : memref<2x22x22xf32, #tpu.memory_space<vmem>>, vector<1x1x16xf32>
      %116 = vector.shape_cast %115 : vector<1x1x16xf32> to vector<16xf32>
      %117 = vector.shape_cast %114 : vector<16xf32> to vector<1x1x16xf32>
      tpu.vector_store %arg7[%c1_91, %c12_92, %c3_93], %117 {strides = array<i32>} : memref<2x22x22xf32, #tpu.memory_space<vmem>>, vector<1x1x16xf32>,
      %c0_94 = arith.constant 0 : index
      %c160 = arith.constant 160 : index
      %118 = vector.load %arg5[%c0_94, %c160] : memref<1x256xf32, #tpu.memory_space<vmem>>, vector<1x16xf32>
      %119 = vector.shape_cast %118 : vector<1x16xf32> to vector<16xf32>
      %c0_95 = arith.constant 0 : index
      %c13 = arith.constant 13 : index
      %c3_96 = arith.constant 3 : index
      %120 = vector.load %arg7[%c0_95, %c13, %c3_96] : memref<2x22x22xf32, #tpu.memory_space<vmem>>, vector<1x1x16xf32>
      %121 = vector.shape_cast %120 : vector<1x1x16xf32> to vector<16xf32>
      %122 = vector.shape_cast %119 : vector<16xf32> to vector<1x1x16xf32>
      tpu.vector_store %arg7[%c0_95, %c13, %c3_96], %122 {strides = array<i32>} : memref<2x22x22xf32, #tpu.memory_space<vmem>>, vector<1x1x16xf32>,
      %c0_97 = arith.constant 0 : index
      %c160_98 = arith.constant 160 : index
      %123 = vector.load %arg6[%c0_97, %c160_98] : memref<1x256xf32, #tpu.memory_space<vmem>>, vector<1x16xf32>
      %124 = vector.shape_cast %123 : vector<1x16xf32> to vector<16xf32>
      %c1_99 = arith.constant 1 : index
      %c13_100 = arith.constant 13 : index
      %c3_101 = arith.constant 3 : index
      %125 = vector.load %arg7[%c1_99, %c13_100, %c3_101] : memref<2x22x22xf32, #tpu.memory_space<vmem>>, vector<1x1x16xf32>
      %126 = vector.shape_cast %125 : vector<1x1x16xf32> to vector<16xf32>
      %127 = vector.shape_cast %124 : vector<16xf32> to vector<1x1x16xf32>
      tpu.vector_store %arg7[%c1_99, %c13_100, %c3_101], %127 {strides = array<i32>} : memref<2x22x22xf32, #tpu.memory_space<vmem>>, vector<1x1x16xf32>,
      %c0_102 = arith.constant 0 : index
      %c176 = arith.constant 176 : index
      %128 = vector.load %arg5[%c0_102, %c176] : memref<1x256xf32, #tpu.memory_space<vmem>>, vector<1x16xf32>
      %129 = vector.shape_cast %128 : vector<1x16xf32> to vector<16xf32>
      %c0_103 = arith.constant 0 : index
      %c14 = arith.constant 14 : index
      %c3_104 = arith.constant 3 : index
      %130 = vector.load %arg7[%c0_103, %c14, %c3_104] : memref<2x22x22xf32, #tpu.memory_space<vmem>>, vector<1x1x16xf32>
      %131 = vector.shape_cast %130 : vector<1x1x16xf32> to vector<16xf32>
      %132 = vector.shape_cast %129 : vector<16xf32> to vector<1x1x16xf32>
      tpu.vector_store %arg7[%c0_103, %c14, %c3_104], %132 {strides = array<i32>} : memref<2x22x22xf32, #tpu.memory_space<vmem>>, vector<1x1x16xf32>,
      %c0_105 = arith.constant 0 : index
      %c176_106 = arith.constant 176 : index
      %133 = vector.load %arg6[%c0_105, %c176_106] : memref<1x256xf32, #tpu.memory_space<vmem>>, vector<1x16xf32>
      %134 = vector.shape_cast %133 : vector<1x16xf32> to vector<16xf32>
      %c1_107 = arith.constant 1 : index
      %c14_108 = arith.constant 14 : index
      %c3_109 = arith.constant 3 : index
      %135 = vector.load %arg7[%c1_107, %c14_108, %c3_109] : memref<2x22x22xf32, #tpu.memory_space<vmem>>, vector<1x1x16xf32>
      %136 = vector.shape_cast %135 : vector<1x1x16xf32> to vector<16xf32>
      %137 = vector.shape_cast %134 : vector<16xf32> to vector<1x1x16xf32>
      tpu.vector_store %arg7[%c1_107, %c14_108, %c3_109], %137 {strides = array<i32>} : memref<2x22x22xf32, #tpu.memory_space<vmem>>, vector<1x1x16xf32>,
      %c0_110 = arith.constant 0 : index
      %c192 = arith.constant 192 : index
      %138 = vector.load %arg5[%c0_110, %c192] : memref<1x256xf32, #tpu.memory_space<vmem>>, vector<1x16xf32>
      %139 = vector.shape_cast %138 : vector<1x16xf32> to vector<16xf32>
      %c0_111 = arith.constant 0 : index
      %c15 = arith.constant 15 : index
      %c3_112 = arith.constant 3 : index
      %140 = vector.load %arg7[%c0_111, %c15, %c3_112] : memref<2x22x22xf32, #tpu.memory_space<vmem>>, vector<1x1x16xf32>
      %141 = vector.shape_cast %140 : vector<1x1x16xf32> to vector<16xf32>
      %142 = vector.shape_cast %139 : vector<16xf32> to vector<1x1x16xf32>
      tpu.vector_store %arg7[%c0_111, %c15, %c3_112], %142 {strides = array<i32>} : memref<2x22x22xf32, #tpu.memory_space<vmem>>, vector<1x1x16xf32>,
      %c0_113 = arith.constant 0 : index
      %c192_114 = arith.constant 192 : index
      %143 = vector.load %arg6[%c0_113, %c192_114] : memref<1x256xf32, #tpu.memory_space<vmem>>, vector<1x16xf32>
      %144 = vector.shape_cast %143 : vector<1x16xf32> to vector<16xf32>
      %c1_115 = arith.constant 1 : index
      %c15_116 = arith.constant 15 : index
      %c3_117 = arith.constant 3 : index
      %145 = vector.load %arg7[%c1_115, %c15_116, %c3_117] : memref<2x22x22xf32, #tpu.memory_space<vmem>>, vector<1x1x16xf32>
      %146 = vector.shape_cast %145 : vector<1x1x16xf32> to vector<16xf32>
      %147 = vector.shape_cast %144 : vector<16xf32> to vector<1x1x16xf32>
      tpu.vector_store %arg7[%c1_115, %c15_116, %c3_117], %147 {strides = array<i32>} : memref<2x22x22xf32, #tpu.memory_space<vmem>>, vector<1x1x16xf32>,
      %c0_118 = arith.constant 0 : index
      %c208 = arith.constant 208 : index
      %148 = vector.load %arg5[%c0_118, %c208] : memref<1x256xf32, #tpu.memory_space<vmem>>, vector<1x16xf32>
      %149 = vector.shape_cast %148 : vector<1x16xf32> to vector<16xf32>
      %c0_119 = arith.constant 0 : index
      %c16_120 = arith.constant 16 : index
      %c3_121 = arith.constant 3 : index
      %150 = vector.load %arg7[%c0_119, %c16_120, %c3_121] : memref<2x22x22xf32, #tpu.memory_space<vmem>>, vector<1x1x16xf32>
      %151 = vector.shape_cast %150 : vector<1x1x16xf32> to vector<16xf32>
      %152 = vector.shape_cast %149 : vector<16xf32> to vector<1x1x16xf32>
      tpu.vector_store %arg7[%c0_119, %c16_120, %c3_121], %152 {strides = array<i32>} : memref<2x22x22xf32, #tpu.memory_space<vmem>>, vector<1x1x16xf32>,
      %c0_122 = arith.constant 0 : index
      %c208_123 = arith.constant 208 : index
      %153 = vector.load %arg6[%c0_122, %c208_123] : memref<1x256xf32, #tpu.memory_space<vmem>>, vector<1x16xf32>
      %154 = vector.shape_cast %153 : vector<1x16xf32> to vector<16xf32>
      %c1_124 = arith.constant 1 : index
      %c16_125 = arith.constant 16 : index
      %c3_126 = arith.constant 3 : index
      %155 = vector.load %arg7[%c1_124, %c16_125, %c3_126] : memref<2x22x22xf32, #tpu.memory_space<vmem>>, vector<1x1x16xf32>
      %156 = vector.shape_cast %155 : vector<1x1x16xf32> to vector<16xf32>
      %157 = vector.shape_cast %154 : vector<16xf32> to vector<1x1x16xf32>
      tpu.vector_store %arg7[%c1_124, %c16_125, %c3_126], %157 {strides = array<i32>} : memref<2x22x22xf32, #tpu.memory_space<vmem>>, vector<1x1x16xf32>,
      %c0_127 = arith.constant 0 : index
      %c224 = arith.constant 224 : index
      %158 = vector.load %arg5[%c0_127, %c224] : memref<1x256xf32, #tpu.memory_space<vmem>>, vector<1x16xf32>
      %159 = vector.shape_cast %158 : vector<1x16xf32> to vector<16xf32>
      %c0_128 = arith.constant 0 : index
      %c17 = arith.constant 17 : index
      %c3_129 = arith.constant 3 : index
      %160 = vector.load %arg7[%c0_128, %c17, %c3_129] : memref<2x22x22xf32, #tpu.memory_space<vmem>>, vector<1x1x16xf32>
      %161 = vector.shape_cast %160 : vector<1x1x16xf32> to vector<16xf32>
      %162 = vector.shape_cast %159 : vector<16xf32> to vector<1x1x16xf32>
      tpu.vector_store %arg7[%c0_128, %c17, %c3_129], %162 {strides = array<i32>} : memref<2x22x22xf32, #tpu.memory_space<vmem>>, vector<1x1x16xf32>,
      %c0_130 = arith.constant 0 : index
      %c224_131 = arith.constant 224 : index
      %163 = vector.load %arg6[%c0_130, %c224_131] : memref<1x256xf32, #tpu.memory_space<vmem>>, vector<1x16xf32>
      %164 = vector.shape_cast %163 : vector<1x16xf32> to vector<16xf32>
      %c1_132 = arith.constant 1 : index
      %c17_133 = arith.constant 17 : index
      %c3_134 = arith.constant 3 : index
      %165 = vector.load %arg7[%c1_132, %c17_133, %c3_134] : memref<2x22x22xf32, #tpu.memory_space<vmem>>, vector<1x1x16xf32>
      %166 = vector.shape_cast %165 : vector<1x1x16xf32> to vector<16xf32>
      %167 = vector.shape_cast %164 : vector<16xf32> to vector<1x1x16xf32>
      tpu.vector_store %arg7[%c1_132, %c17_133, %c3_134], %167 {strides = array<i32>} : memref<2x22x22xf32, #tpu.memory_space<vmem>>, vector<1x1x16xf32>,
      %c0_135 = arith.constant 0 : index
      %c240 = arith.constant 240 : index
      %168 = vector.load %arg5[%c0_135, %c240] : memref<1x256xf32, #tpu.memory_space<vmem>>, vector<1x16xf32>
      %169 = vector.shape_cast %168 : vector<1x16xf32> to vector<16xf32>
      %c0_136 = arith.constant 0 : index
      %c18 = arith.constant 18 : index
      %c3_137 = arith.constant 3 : index
      %170 = vector.load %arg7[%c0_136, %c18, %c3_137] : memref<2x22x22xf32, #tpu.memory_space<vmem>>, vector<1x1x16xf32>
      %171 = vector.shape_cast %170 : vector<1x1x16xf32> to vector<16xf32>
      %172 = vector.shape_cast %169 : vector<16xf32> to vector<1x1x16xf32>
      tpu.vector_store %arg7[%c0_136, %c18, %c3_137], %172 {strides = array<i32>} : memref<2x22x22xf32, #tpu.memory_space<vmem>>, vector<1x1x16xf32>,
      %c0_138 = arith.constant 0 : index
      %c240_139 = arith.constant 240 : index
      %173 = vector.load %arg6[%c0_138, %c240_139] : memref<1x256xf32, #tpu.memory_space<vmem>>, vector<1x16xf32>
      %174 = vector.shape_cast %173 : vector<1x16xf32> to vector<16xf32>
      %c1_140 = arith.constant 1 : index
      %c18_141 = arith.constant 18 : index
      %c3_142 = arith.constant 3 : index
      %175 = vector.load %arg7[%c1_140, %c18_141, %c3_142] : memref<2x22x22xf32, #tpu.memory_space<vmem>>, vector<1x1x16xf32>
      %176 = vector.shape_cast %175 : vector<1x1x16xf32> to vector<16xf32>
      %177 = vector.shape_cast %174 : vector<16xf32> to vector<1x1x16xf32>
      tpu.vector_store %arg7[%c1_140, %c18_141, %c3_142], %177 {strides = array<i32>} : memref<2x22x22xf32, #tpu.memory_space<vmem>>, vector<1x1x16xf32>,
      %c0_143 = arith.constant 0 : index
      %c0_144 = arith.constant 0 : index
      %c0_145 = arith.constant 0 : index
      %178 = vector.load %arg7[%c0_143, %c0_144, %c0_145] : memref<2x22x22xf32, #tpu.memory_space<vmem>>, vector<1x16x22xf32>
      %179 = vector.shape_cast %178 : vector<1x16x22xf32> to vector<16x22xf32>
      %c0_146 = arith.constant 0 : index
      %180 = memref.load %arg2[%c0_146] : memref<98xf32, #tpu.memory_space<smem>>
      %181 = vector.extract_strided_slice %179 {offsets = [0, 0], sizes = [16, 16], strides = [1, 1]} : vector<16x22xf32> to vector<16x16xf32>
      %182 = vector.broadcast %180 : f32 to vector<16x16xf32>
      %183 = arith.mulf %182, %181 : vector<16x16xf32>
      %c1_147 = arith.constant 1 : index
      %184 = memref.load %arg2[%c1_147] : memref<98xf32, #tpu.memory_space<smem>>
      %185 = vector.extract_strided_slice %179 {offsets = [0, 1], sizes = [16, 16], strides = [1, 1]} : vector<16x22xf32> to vector<16x16xf32>
      %186 = vector.broadcast %184 : f32 to vector<16x16xf32>
      %187 = arith.mulf %186, %185 : vector<16x16xf32>
      %188 = arith.addf %183, %187 : vector<16x16xf32>
      %c2 = arith.constant 2 : index
      %189 = memref.load %arg2[%c2] : memref<98xf32, #tpu.memory_space<smem>>
      %190 = vector.extract_strided_slice %179 {offsets = [0, 2], sizes = [16, 16], strides = [1, 1]} : vector<16x22xf32> to vector<16x16xf32>
      %191 = vector.broadcast %189 : f32 to vector<16x16xf32>
      %192 = arith.mulf %191, %190 : vector<16x16xf32>
      %193 = arith.addf %188, %192 : vector<16x16xf32>
      %c3_148 = arith.constant 3 : index
      %194 = memref.load %arg2[%c3_148] : memref<98xf32, #tpu.memory_space<smem>>
      %195 = vector.extract_strided_slice %179 {offsets = [0, 3], sizes = [16, 16], strides = [1, 1]} : vector<16x22xf32> to vector<16x16xf32>
      %196 = vector.broadcast %194 : f32 to vector<16x16xf32>
      %197 = arith.mulf %196, %195 : vector<16x16xf32>
      %198 = arith.addf %193, %197 : vector<16x16xf32>
      %c4_149 = arith.constant 4 : index
      %199 = memref.load %arg2[%c4_149] : memref<98xf32, #tpu.memory_space<smem>>
      %200 = vector.extract_strided_slice %179 {offsets = [0, 4], sizes = [16, 16], strides = [1, 1]} : vector<16x22xf32> to vector<16x16xf32>
      %201 = vector.broadcast %199 : f32 to vector<16x16xf32>
      %202 = arith.mulf %201, %200 : vector<16x16xf32>
      %203 = arith.addf %198, %202 : vector<16x16xf32>
      %c5_150 = arith.constant 5 : index
      %204 = memref.load %arg2[%c5_150] : memref<98xf32, #tpu.memory_space<smem>>
      %205 = vector.extract_strided_slice %179 {offsets = [0, 5], sizes = [16, 16], strides = [1, 1]} : vector<16x22xf32> to vector<16x16xf32>
      %206 = vector.broadcast %204 : f32 to vector<16x16xf32>
      %207 = arith.mulf %206, %205 : vector<16x16xf32>
      %208 = arith.addf %203, %207 : vector<16x16xf32>
      %c6_151 = arith.constant 6 : index
      %209 = memref.load %arg2[%c6_151] : memref<98xf32, #tpu.memory_space<smem>>
      %210 = vector.extract_strided_slice %179 {offsets = [0, 6], sizes = [16, 16], strides = [1, 1]} : vector<16x22xf32> to vector<16x16xf32>
      %211 = vector.broadcast %209 : f32 to vector<16x16xf32>
      %212 = arith.mulf %211, %210 : vector<16x16xf32>
      %213 = arith.addf %208, %212 : vector<16x16xf32>
      %c0_152 = arith.constant 0 : index
      %c1_153 = arith.constant 1 : index
      %c0_154 = arith.constant 0 : index
      %214 = vector.load %arg7[%c0_152, %c1_153, %c0_154] : memref<2x22x22xf32, #tpu.memory_space<vmem>>, vector<1x16x22xf32>
      %215 = vector.shape_cast %214 : vector<1x16x22xf32> to vector<16x22xf32>
      %c7_155 = arith.constant 7 : index
      %216 = memref.load %arg2[%c7_155] : memref<98xf32, #tpu.memory_space<smem>>
      %217 = vector.extract_strided_slice %215 {offsets = [0, 0], sizes = [16, 16], strides = [1, 1]} : vector<16x22xf32> to vector<16x16xf32>
      %218 = vector.broadcast %216 : f32 to vector<16x16xf32>
      %219 = arith.mulf %218, %217 : vector<16x16xf32>
      %220 = arith.addf %213, %219 : vector<16x16xf32>
      %c8_156 = arith.constant 8 : index
      %221 = memref.load %arg2[%c8_156] : memref<98xf32, #tpu.memory_space<smem>>
      %222 = vector.extract_strided_slice %215 {offsets = [0, 1], sizes = [16, 16], strides = [1, 1]} : vector<16x22xf32> to vector<16x16xf32>
      %223 = vector.broadcast %221 : f32 to vector<16x16xf32>
      %224 = arith.mulf %223, %222 : vector<16x16xf32>
      %225 = arith.addf %220, %224 : vector<16x16xf32>
      %c9_157 = arith.constant 9 : index
      %226 = memref.load %arg2[%c9_157] : memref<98xf32, #tpu.memory_space<smem>>
      %227 = vector.extract_strided_slice %215 {offsets = [0, 2], sizes = [16, 16], strides = [1, 1]} : vector<16x22xf32> to vector<16x16xf32>
      %228 = vector.broadcast %226 : f32 to vector<16x16xf32>
      %229 = arith.mulf %228, %227 : vector<16x16xf32>
      %230 = arith.addf %225, %229 : vector<16x16xf32>
      %c10_158 = arith.constant 10 : index
      %231 = memref.load %arg2[%c10_158] : memref<98xf32, #tpu.memory_space<smem>>
      %232 = vector.extract_strided_slice %215 {offsets = [0, 3], sizes = [16, 16], strides = [1, 1]} : vector<16x22xf32> to vector<16x16xf32>
      %233 = vector.broadcast %231 : f32 to vector<16x16xf32>
      %234 = arith.mulf %233, %232 : vector<16x16xf32>
      %235 = arith.addf %230, %234 : vector<16x16xf32>
      %c11_159 = arith.constant 11 : index
      %236 = memref.load %arg2[%c11_159] : memref<98xf32, #tpu.memory_space<smem>>
      %237 = vector.extract_strided_slice %215 {offsets = [0, 4], sizes = [16, 16], strides = [1, 1]} : vector<16x22xf32> to vector<16x16xf32>
      %238 = vector.broadcast %236 : f32 to vector<16x16xf32>
      %239 = arith.mulf %238, %237 : vector<16x16xf32>
      %240 = arith.addf %235, %239 : vector<16x16xf32>
      %c12_160 = arith.constant 12 : index
      %241 = memref.load %arg2[%c12_160] : memref<98xf32, #tpu.memory_space<smem>>
      %242 = vector.extract_strided_slice %215 {offsets = [0, 5], sizes = [16, 16], strides = [1, 1]} : vector<16x22xf32> to vector<16x16xf32>
      %243 = vector.broadcast %241 : f32 to vector<16x16xf32>
      %244 = arith.mulf %243, %242 : vector<16x16xf32>
      %245 = arith.addf %240, %244 : vector<16x16xf32>
      %c13_161 = arith.constant 13 : index
      %246 = memref.load %arg2[%c13_161] : memref<98xf32, #tpu.memory_space<smem>>
      %247 = vector.extract_strided_slice %215 {offsets = [0, 6], sizes = [16, 16], strides = [1, 1]} : vector<16x22xf32> to vector<16x16xf32>
      %248 = vector.broadcast %246 : f32 to vector<16x16xf32>
      %249 = arith.mulf %248, %247 : vector<16x16xf32>
      %250 = arith.addf %245, %249 : vector<16x16xf32>
      %c0_162 = arith.constant 0 : index
      %c2_163 = arith.constant 2 : index
      %c0_164 = arith.constant 0 : index
      %251 = vector.load %arg7[%c0_162, %c2_163, %c0_164] : memref<2x22x22xf32, #tpu.memory_space<vmem>>, vector<1x16x22xf32>
      %252 = vector.shape_cast %251 : vector<1x16x22xf32> to vector<16x22xf32>
      %c14_165 = arith.constant 14 : index
      %253 = memref.load %arg2[%c14_165] : memref<98xf32, #tpu.memory_space<smem>>
      %254 = vector.extract_strided_slice %252 {offsets = [0, 0], sizes = [16, 16], strides = [1, 1]} : vector<16x22xf32> to vector<16x16xf32>
      %255 = vector.broadcast %253 : f32 to vector<16x16xf32>
      %256 = arith.mulf %255, %254 : vector<16x16xf32>
      %257 = arith.addf %250, %256 : vector<16x16xf32>
      %c15_166 = arith.constant 15 : index
      %258 = memref.load %arg2[%c15_166] : memref<98xf32, #tpu.memory_space<smem>>
      %259 = vector.extract_strided_slice %252 {offsets = [0, 1], sizes = [16, 16], strides = [1, 1]} : vector<16x22xf32> to vector<16x16xf32>
      %260 = vector.broadcast %258 : f32 to vector<16x16xf32>
      %261 = arith.mulf %260, %259 : vector<16x16xf32>
      %262 = arith.addf %257, %261 : vector<16x16xf32>
      %c16_167 = arith.constant 16 : index
      %263 = memref.load %arg2[%c16_167] : memref<98xf32, #tpu.memory_space<smem>>
      %264 = vector.extract_strided_slice %252 {offsets = [0, 2], sizes = [16, 16], strides = [1, 1]} : vector<16x22xf32> to vector<16x16xf32>
      %265 = vector.broadcast %263 : f32 to vector<16x16xf32>
      %266 = arith.mulf %265, %264 : vector<16x16xf32>
      %267 = arith.addf %262, %266 : vector<16x16xf32>
      %c17_168 = arith.constant 17 : index
      %268 = memref.load %arg2[%c17_168] : memref<98xf32, #tpu.memory_space<smem>>
      %269 = vector.extract_strided_slice %252 {offsets = [0, 3], sizes = [16, 16], strides = [1, 1]} : vector<16x22xf32> to vector<16x16xf32>
      %270 = vector.broadcast %268 : f32 to vector<16x16xf32>
      %271 = arith.mulf %270, %269 : vector<16x16xf32>
      %272 = arith.addf %267, %271 : vector<16x16xf32>
      %c18_169 = arith.constant 18 : index
      %273 = memref.load %arg2[%c18_169] : memref<98xf32, #tpu.memory_space<smem>>
      %274 = vector.extract_strided_slice %252 {offsets = [0, 4], sizes = [16, 16], strides = [1, 1]} : vector<16x22xf32> to vector<16x16xf32>
      %275 = vector.broadcast %273 : f32 to vector<16x16xf32>
      %276 = arith.mulf %275, %274 : vector<16x16xf32>
      %277 = arith.addf %272, %276 : vector<16x16xf32>
      %c19 = arith.constant 19 : index
      %278 = memref.load %arg2[%c19] : memref<98xf32, #tpu.memory_space<smem>>
      %279 = vector.extract_strided_slice %252 {offsets = [0, 5], sizes = [16, 16], strides = [1, 1]} : vector<16x22xf32> to vector<16x16xf32>
      %280 = vector.broadcast %278 : f32 to vector<16x16xf32>
      %281 = arith.mulf %280, %279 : vector<16x16xf32>
      %282 = arith.addf %277, %281 : vector<16x16xf32>
      %c20 = arith.constant 20 : index
      %283 = memref.load %arg2[%c20] : memref<98xf32, #tpu.memory_space<smem>>
      %284 = vector.extract_strided_slice %252 {offsets = [0, 6], sizes = [16, 16], strides = [1, 1]} : vector<16x22xf32> to vector<16x16xf32>
      %285 = vector.broadcast %283 : f32 to vector<16x16xf32>
      %286 = arith.mulf %285, %284 : vector<16x16xf32>
      %287 = arith.addf %282, %286 : vector<16x16xf32>
      %c0_170 = arith.constant 0 : index
      %c3_171 = arith.constant 3 : index
      %c0_172 = arith.constant 0 : index
      %288 = vector.load %arg7[%c0_170, %c3_171, %c0_172] : memref<2x22x22xf32, #tpu.memory_space<vmem>>, vector<1x16x22xf32>
      %289 = vector.shape_cast %288 : vector<1x16x22xf32> to vector<16x22xf32>
      %c21 = arith.constant 21 : index
      %290 = memref.load %arg2[%c21] : memref<98xf32, #tpu.memory_space<smem>>
      %291 = vector.extract_strided_slice %289 {offsets = [0, 0], sizes = [16, 16], strides = [1, 1]} : vector<16x22xf32> to vector<16x16xf32>
      %292 = vector.broadcast %290 : f32 to vector<16x16xf32>
      %293 = arith.mulf %292, %291 : vector<16x16xf32>
      %294 = arith.addf %287, %293 : vector<16x16xf32>
      %c22 = arith.constant 22 : index
      %295 = memref.load %arg2[%c22] : memref<98xf32, #tpu.memory_space<smem>>
      %296 = vector.extract_strided_slice %289 {offsets = [0, 1], sizes = [16, 16], strides = [1, 1]} : vector<16x22xf32> to vector<16x16xf32>
      %297 = vector.broadcast %295 : f32 to vector<16x16xf32>
      %298 = arith.mulf %297, %296 : vector<16x16xf32>
      %299 = arith.addf %294, %298 : vector<16x16xf32>
      %c23 = arith.constant 23 : index
      %300 = memref.load %arg2[%c23] : memref<98xf32, #tpu.memory_space<smem>>
      %301 = vector.extract_strided_slice %289 {offsets = [0, 2], sizes = [16, 16], strides = [1, 1]} : vector<16x22xf32> to vector<16x16xf32>
      %302 = vector.broadcast %300 : f32 to vector<16x16xf32>
      %303 = arith.mulf %302, %301 : vector<16x16xf32>
      %304 = arith.addf %299, %303 : vector<16x16xf32>
      %c24 = arith.constant 24 : index
      %305 = memref.load %arg2[%c24] : memref<98xf32, #tpu.memory_space<smem>>
      %306 = vector.extract_strided_slice %289 {offsets = [0, 3], sizes = [16, 16], strides = [1, 1]} : vector<16x22xf32> to vector<16x16xf32>
      %307 = vector.broadcast %305 : f32 to vector<16x16xf32>
      %308 = arith.mulf %307, %306 : vector<16x16xf32>
      %309 = arith.addf %304, %308 : vector<16x16xf32>
      %c25 = arith.constant 25 : index
      %310 = memref.load %arg2[%c25] : memref<98xf32, #tpu.memory_space<smem>>
      %311 = vector.extract_strided_slice %289 {offsets = [0, 4], sizes = [16, 16], strides = [1, 1]} : vector<16x22xf32> to vector<16x16xf32>
      %312 = vector.broadcast %310 : f32 to vector<16x16xf32>
      %313 = arith.mulf %312, %311 : vector<16x16xf32>
      %314 = arith.addf %309, %313 : vector<16x16xf32>
      %c26 = arith.constant 26 : index
      %315 = memref.load %arg2[%c26] : memref<98xf32, #tpu.memory_space<smem>>
      %316 = vector.extract_strided_slice %289 {offsets = [0, 5], sizes = [16, 16], strides = [1, 1]} : vector<16x22xf32> to vector<16x16xf32>
      %317 = vector.broadcast %315 : f32 to vector<16x16xf32>
      %318 = arith.mulf %317, %316 : vector<16x16xf32>
      %319 = arith.addf %314, %318 : vector<16x16xf32>
      %c27 = arith.constant 27 : index
      %320 = memref.load %arg2[%c27] : memref<98xf32, #tpu.memory_space<smem>>
      %321 = vector.extract_strided_slice %289 {offsets = [0, 6], sizes = [16, 16], strides = [1, 1]} : vector<16x22xf32> to vector<16x16xf32>
      %322 = vector.broadcast %320 : f32 to vector<16x16xf32>
      %323 = arith.mulf %322, %321 : vector<16x16xf32>
      %324 = arith.addf %319, %323 : vector<16x16xf32>
      %c0_173 = arith.constant 0 : index
      %c4_174 = arith.constant 4 : index
      %c0_175 = arith.constant 0 : index
      %325 = vector.load %arg7[%c0_173, %c4_174, %c0_175] : memref<2x22x22xf32, #tpu.memory_space<vmem>>, vector<1x16x22xf32>
      %326 = vector.shape_cast %325 : vector<1x16x22xf32> to vector<16x22xf32>
      %c28 = arith.constant 28 : index
      %327 = memref.load %arg2[%c28] : memref<98xf32, #tpu.memory_space<smem>>
      %328 = vector.extract_strided_slice %326 {offsets = [0, 0], sizes = [16, 16], strides = [1, 1]} : vector<16x22xf32> to vector<16x16xf32>
      %329 = vector.broadcast %327 : f32 to vector<16x16xf32>
      %330 = arith.mulf %329, %328 : vector<16x16xf32>
      %331 = arith.addf %324, %330 : vector<16x16xf32>
      %c29 = arith.constant 29 : index
      %332 = memref.load %arg2[%c29] : memref<98xf32, #tpu.memory_space<smem>>
      %333 = vector.extract_strided_slice %326 {offsets = [0, 1], sizes = [16, 16], strides = [1, 1]} : vector<16x22xf32> to vector<16x16xf32>
      %334 = vector.broadcast %332 : f32 to vector<16x16xf32>
      %335 = arith.mulf %334, %333 : vector<16x16xf32>
      %336 = arith.addf %331, %335 : vector<16x16xf32>
      %c30 = arith.constant 30 : index
      %337 = memref.load %arg2[%c30] : memref<98xf32, #tpu.memory_space<smem>>
      %338 = vector.extract_strided_slice %326 {offsets = [0, 2], sizes = [16, 16], strides = [1, 1]} : vector<16x22xf32> to vector<16x16xf32>
      %339 = vector.broadcast %337 : f32 to vector<16x16xf32>
      %340 = arith.mulf %339, %338 : vector<16x16xf32>
      %341 = arith.addf %336, %340 : vector<16x16xf32>
      %c31 = arith.constant 31 : index
      %342 = memref.load %arg2[%c31] : memref<98xf32, #tpu.memory_space<smem>>
      %343 = vector.extract_strided_slice %326 {offsets = [0, 3], sizes = [16, 16], strides = [1, 1]} : vector<16x22xf32> to vector<16x16xf32>
      %344 = vector.broadcast %342 : f32 to vector<16x16xf32>
      %345 = arith.mulf %344, %343 : vector<16x16xf32>
      %346 = arith.addf %341, %345 : vector<16x16xf32>
      %c32_176 = arith.constant 32 : index
      %347 = memref.load %arg2[%c32_176] : memref<98xf32, #tpu.memory_space<smem>>
      %348 = vector.extract_strided_slice %326 {offsets = [0, 4], sizes = [16, 16], strides = [1, 1]} : vector<16x22xf32> to vector<16x16xf32>
      %349 = vector.broadcast %347 : f32 to vector<16x16xf32>
      %350 = arith.mulf %349, %348 : vector<16x16xf32>
      %351 = arith.addf %346, %350 : vector<16x16xf32>
      %c33 = arith.constant 33 : index
      %352 = memref.load %arg2[%c33] : memref<98xf32, #tpu.memory_space<smem>>
      %353 = vector.extract_strided_slice %326 {offsets = [0, 5], sizes = [16, 16], strides = [1, 1]} : vector<16x22xf32> to vector<16x16xf32>
      %354 = vector.broadcast %352 : f32 to vector<16x16xf32>
      %355 = arith.mulf %354, %353 : vector<16x16xf32>
      %356 = arith.addf %351, %355 : vector<16x16xf32>
      %c34 = arith.constant 34 : index
      %357 = memref.load %arg2[%c34] : memref<98xf32, #tpu.memory_space<smem>>
      %358 = vector.extract_strided_slice %326 {offsets = [0, 6], sizes = [16, 16], strides = [1, 1]} : vector<16x22xf32> to vector<16x16xf32>
      %359 = vector.broadcast %357 : f32 to vector<16x16xf32>
      %360 = arith.mulf %359, %358 : vector<16x16xf32>
      %361 = arith.addf %356, %360 : vector<16x16xf32>
      %c0_177 = arith.constant 0 : index
      %c5_178 = arith.constant 5 : index
      %c0_179 = arith.constant 0 : index
      %362 = vector.load %arg7[%c0_177, %c5_178, %c0_179] : memref<2x22x22xf32, #tpu.memory_space<vmem>>, vector<1x16x22xf32>
      %363 = vector.shape_cast %362 : vector<1x16x22xf32> to vector<16x22xf32>
      %c35 = arith.constant 35 : index
      %364 = memref.load %arg2[%c35] : memref<98xf32, #tpu.memory_space<smem>>
      %365 = vector.extract_strided_slice %363 {offsets = [0, 0], sizes = [16, 16], strides = [1, 1]} : vector<16x22xf32> to vector<16x16xf32>
      %366 = vector.broadcast %364 : f32 to vector<16x16xf32>
      %367 = arith.mulf %366, %365 : vector<16x16xf32>
      %368 = arith.addf %361, %367 : vector<16x16xf32>
      %c36 = arith.constant 36 : index
      %369 = memref.load %arg2[%c36] : memref<98xf32, #tpu.memory_space<smem>>
      %370 = vector.extract_strided_slice %363 {offsets = [0, 1], sizes = [16, 16], strides = [1, 1]} : vector<16x22xf32> to vector<16x16xf32>
      %371 = vector.broadcast %369 : f32 to vector<16x16xf32>
      %372 = arith.mulf %371, %370 : vector<16x16xf32>
      %373 = arith.addf %368, %372 : vector<16x16xf32>
      %c37 = arith.constant 37 : index
      %374 = memref.load %arg2[%c37] : memref<98xf32, #tpu.memory_space<smem>>
      %375 = vector.extract_strided_slice %363 {offsets = [0, 2], sizes = [16, 16], strides = [1, 1]} : vector<16x22xf32> to vector<16x16xf32>
      %376 = vector.broadcast %374 : f32 to vector<16x16xf32>
      %377 = arith.mulf %376, %375 : vector<16x16xf32>
      %378 = arith.addf %373, %377 : vector<16x16xf32>
      %c38 = arith.constant 38 : index
      %379 = memref.load %arg2[%c38] : memref<98xf32, #tpu.memory_space<smem>>
      %380 = vector.extract_strided_slice %363 {offsets = [0, 3], sizes = [16, 16], strides = [1, 1]} : vector<16x22xf32> to vector<16x16xf32>
      %381 = vector.broadcast %379 : f32 to vector<16x16xf32>
      %382 = arith.mulf %381, %380 : vector<16x16xf32>
      %383 = arith.addf %378, %382 : vector<16x16xf32>
      %c39 = arith.constant 39 : index
      %384 = memref.load %arg2[%c39] : memref<98xf32, #tpu.memory_space<smem>>
      %385 = vector.extract_strided_slice %363 {offsets = [0, 4], sizes = [16, 16], strides = [1, 1]} : vector<16x22xf32> to vector<16x16xf32>
      %386 = vector.broadcast %384 : f32 to vector<16x16xf32>
      %387 = arith.mulf %386, %385 : vector<16x16xf32>
      %388 = arith.addf %383, %387 : vector<16x16xf32>
      %c40 = arith.constant 40 : index
      %389 = memref.load %arg2[%c40] : memref<98xf32, #tpu.memory_space<smem>>
      %390 = vector.extract_strided_slice %363 {offsets = [0, 5], sizes = [16, 16], strides = [1, 1]} : vector<16x22xf32> to vector<16x16xf32>
      %391 = vector.broadcast %389 : f32 to vector<16x16xf32>
      %392 = arith.mulf %391, %390 : vector<16x16xf32>
      %393 = arith.addf %388, %392 : vector<16x16xf32>
      %c41 = arith.constant 41 : index
      %394 = memref.load %arg2[%c41] : memref<98xf32, #tpu.memory_space<smem>>
      %395 = vector.extract_strided_slice %363 {offsets = [0, 6], sizes = [16, 16], strides = [1, 1]} : vector<16x22xf32> to vector<16x16xf32>
      %396 = vector.broadcast %394 : f32 to vector<16x16xf32>
      %397 = arith.mulf %396, %395 : vector<16x16xf32>
      %398 = arith.addf %393, %397 : vector<16x16xf32>
      %c0_180 = arith.constant 0 : index
      %c6_181 = arith.constant 6 : index
      %c0_182 = arith.constant 0 : index
      %399 = vector.load %arg7[%c0_180, %c6_181, %c0_182] : memref<2x22x22xf32, #tpu.memory_space<vmem>>, vector<1x16x22xf32>
      %400 = vector.shape_cast %399 : vector<1x16x22xf32> to vector<16x22xf32>
      %c42 = arith.constant 42 : index
      %401 = memref.load %arg2[%c42] : memref<98xf32, #tpu.memory_space<smem>>
      %402 = vector.extract_strided_slice %400 {offsets = [0, 0], sizes = [16, 16], strides = [1, 1]} : vector<16x22xf32> to vector<16x16xf32>
      %403 = vector.broadcast %401 : f32 to vector<16x16xf32>
      %404 = arith.mulf %403, %402 : vector<16x16xf32>
      %405 = arith.addf %398, %404 : vector<16x16xf32>
      %c43 = arith.constant 43 : index
      %406 = memref.load %arg2[%c43] : memref<98xf32, #tpu.memory_space<smem>>
      %407 = vector.extract_strided_slice %400 {offsets = [0, 1], sizes = [16, 16], strides = [1, 1]} : vector<16x22xf32> to vector<16x16xf32>
      %408 = vector.broadcast %406 : f32 to vector<16x16xf32>
      %409 = arith.mulf %408, %407 : vector<16x16xf32>
      %410 = arith.addf %405, %409 : vector<16x16xf32>
      %c44 = arith.constant 44 : index
      %411 = memref.load %arg2[%c44] : memref<98xf32, #tpu.memory_space<smem>>
      %412 = vector.extract_strided_slice %400 {offsets = [0, 2], sizes = [16, 16], strides = [1, 1]} : vector<16x22xf32> to vector<16x16xf32>
      %413 = vector.broadcast %411 : f32 to vector<16x16xf32>
      %414 = arith.mulf %413, %412 : vector<16x16xf32>
      %415 = arith.addf %410, %414 : vector<16x16xf32>
      %c45 = arith.constant 45 : index
      %416 = memref.load %arg2[%c45] : memref<98xf32, #tpu.memory_space<smem>>
      %417 = vector.extract_strided_slice %400 {offsets = [0, 3], sizes = [16, 16], strides = [1, 1]} : vector<16x22xf32> to vector<16x16xf32>
      %418 = vector.broadcast %416 : f32 to vector<16x16xf32>
      %419 = arith.mulf %418, %417 : vector<16x16xf32>
      %420 = arith.addf %415, %419 : vector<16x16xf32>
      %c46 = arith.constant 46 : index
      %421 = memref.load %arg2[%c46] : memref<98xf32, #tpu.memory_space<smem>>
      %422 = vector.extract_strided_slice %400 {offsets = [0, 4], sizes = [16, 16], strides = [1, 1]} : vector<16x22xf32> to vector<16x16xf32>
      %423 = vector.broadcast %421 : f32 to vector<16x16xf32>
      %424 = arith.mulf %423, %422 : vector<16x16xf32>
      %425 = arith.addf %420, %424 : vector<16x16xf32>
      %c47 = arith.constant 47 : index
      %426 = memref.load %arg2[%c47] : memref<98xf32, #tpu.memory_space<smem>>
      %427 = vector.extract_strided_slice %400 {offsets = [0, 5], sizes = [16, 16], strides = [1, 1]} : vector<16x22xf32> to vector<16x16xf32>
      %428 = vector.broadcast %426 : f32 to vector<16x16xf32>
      %429 = arith.mulf %428, %427 : vector<16x16xf32>
      %430 = arith.addf %425, %429 : vector<16x16xf32>
      %c48_183 = arith.constant 48 : index
      %431 = memref.load %arg2[%c48_183] : memref<98xf32, #tpu.memory_space<smem>>
      %432 = vector.extract_strided_slice %400 {offsets = [0, 6], sizes = [16, 16], strides = [1, 1]} : vector<16x22xf32> to vector<16x16xf32>
      %433 = vector.broadcast %431 : f32 to vector<16x16xf32>
      %434 = arith.mulf %433, %432 : vector<16x16xf32>
      %435 = arith.addf %430, %434 : vector<16x16xf32>
      %c1_184 = arith.constant 1 : index
      %c0_185 = arith.constant 0 : index
      %c0_186 = arith.constant 0 : index
      %436 = vector.load %arg7[%c1_184, %c0_185, %c0_186] : memref<2x22x22xf32, #tpu.memory_space<vmem>>, vector<1x16x22xf32>
      %437 = vector.shape_cast %436 : vector<1x16x22xf32> to vector<16x22xf32>
      %c49 = arith.constant 49 : index
      %438 = memref.load %arg2[%c49] : memref<98xf32, #tpu.memory_space<smem>>
      %439 = vector.extract_strided_slice %437 {offsets = [0, 0], sizes = [16, 16], strides = [1, 1]} : vector<16x22xf32> to vector<16x16xf32>
      %440 = vector.broadcast %438 : f32 to vector<16x16xf32>
      %441 = arith.mulf %440, %439 : vector<16x16xf32>
      %442 = arith.addf %435, %441 : vector<16x16xf32>
      %c50 = arith.constant 50 : index
      %443 = memref.load %arg2[%c50] : memref<98xf32, #tpu.memory_space<smem>>
      %444 = vector.extract_strided_slice %437 {offsets = [0, 1], sizes = [16, 16], strides = [1, 1]} : vector<16x22xf32> to vector<16x16xf32>
      %445 = vector.broadcast %443 : f32 to vector<16x16xf32>
      %446 = arith.mulf %445, %444 : vector<16x16xf32>
      %447 = arith.addf %442, %446 : vector<16x16xf32>
      %c51 = arith.constant 51 : index
      %448 = memref.load %arg2[%c51] : memref<98xf32, #tpu.memory_space<smem>>
      %449 = vector.extract_strided_slice %437 {offsets = [0, 2], sizes = [16, 16], strides = [1, 1]} : vector<16x22xf32> to vector<16x16xf32>
      %450 = vector.broadcast %448 : f32 to vector<16x16xf32>
      %451 = arith.mulf %450, %449 : vector<16x16xf32>
      %452 = arith.addf %447, %451 : vector<16x16xf32>
      %c52 = arith.constant 52 : index
      %453 = memref.load %arg2[%c52] : memref<98xf32, #tpu.memory_space<smem>>
      %454 = vector.extract_strided_slice %437 {offsets = [0, 3], sizes = [16, 16], strides = [1, 1]} : vector<16x22xf32> to vector<16x16xf32>
      %455 = vector.broadcast %453 : f32 to vector<16x16xf32>
      %456 = arith.mulf %455, %454 : vector<16x16xf32>
      %457 = arith.addf %452, %456 : vector<16x16xf32>
      %c53 = arith.constant 53 : index
      %458 = memref.load %arg2[%c53] : memref<98xf32, #tpu.memory_space<smem>>
      %459 = vector.extract_strided_slice %437 {offsets = [0, 4], sizes = [16, 16], strides = [1, 1]} : vector<16x22xf32> to vector<16x16xf32>
      %460 = vector.broadcast %458 : f32 to vector<16x16xf32>
      %461 = arith.mulf %460, %459 : vector<16x16xf32>
      %462 = arith.addf %457, %461 : vector<16x16xf32>
      %c54 = arith.constant 54 : index
      %463 = memref.load %arg2[%c54] : memref<98xf32, #tpu.memory_space<smem>>
      %464 = vector.extract_strided_slice %437 {offsets = [0, 5], sizes = [16, 16], strides = [1, 1]} : vector<16x22xf32> to vector<16x16xf32>
      %465 = vector.broadcast %463 : f32 to vector<16x16xf32>
      %466 = arith.mulf %465, %464 : vector<16x16xf32>
      %467 = arith.addf %462, %466 : vector<16x16xf32>
      %c55 = arith.constant 55 : index
      %468 = memref.load %arg2[%c55] : memref<98xf32, #tpu.memory_space<smem>>
      %469 = vector.extract_strided_slice %437 {offsets = [0, 6], sizes = [16, 16], strides = [1, 1]} : vector<16x22xf32> to vector<16x16xf32>
      %470 = vector.broadcast %468 : f32 to vector<16x16xf32>
      %471 = arith.mulf %470, %469 : vector<16x16xf32>
      %472 = arith.addf %467, %471 : vector<16x16xf32>
      %c1_187 = arith.constant 1 : index
      %c1_188 = arith.constant 1 : index
      %c0_189 = arith.constant 0 : index
      %473 = vector.load %arg7[%c1_187, %c1_188, %c0_189] : memref<2x22x22xf32, #tpu.memory_space<vmem>>, vector<1x16x22xf32>
      %474 = vector.shape_cast %473 : vector<1x16x22xf32> to vector<16x22xf32>
      %c56 = arith.constant 56 : index
      %475 = memref.load %arg2[%c56] : memref<98xf32, #tpu.memory_space<smem>>
      %476 = vector.extract_strided_slice %474 {offsets = [0, 0], sizes = [16, 16], strides = [1, 1]} : vector<16x22xf32> to vector<16x16xf32>
      %477 = vector.broadcast %475 : f32 to vector<16x16xf32>
      %478 = arith.mulf %477, %476 : vector<16x16xf32>
      %479 = arith.addf %472, %478 : vector<16x16xf32>
      %c57 = arith.constant 57 : index
      %480 = memref.load %arg2[%c57] : memref<98xf32, #tpu.memory_space<smem>>
      %481 = vector.extract_strided_slice %474 {offsets = [0, 1], sizes = [16, 16], strides = [1, 1]} : vector<16x22xf32> to vector<16x16xf32>
      %482 = vector.broadcast %480 : f32 to vector<16x16xf32>
      %483 = arith.mulf %482, %481 : vector<16x16xf32>
      %484 = arith.addf %479, %483 : vector<16x16xf32>
      %c58 = arith.constant 58 : index
      %485 = memref.load %arg2[%c58] : memref<98xf32, #tpu.memory_space<smem>>
      %486 = vector.extract_strided_slice %474 {offsets = [0, 2], sizes = [16, 16], strides = [1, 1]} : vector<16x22xf32> to vector<16x16xf32>
      %487 = vector.broadcast %485 : f32 to vector<16x16xf32>
      %488 = arith.mulf %487, %486 : vector<16x16xf32>
      %489 = arith.addf %484, %488 : vector<16x16xf32>
      %c59 = arith.constant 59 : index
      %490 = memref.load %arg2[%c59] : memref<98xf32, #tpu.memory_space<smem>>
      %491 = vector.extract_strided_slice %474 {offsets = [0, 3], sizes = [16, 16], strides = [1, 1]} : vector<16x22xf32> to vector<16x16xf32>
      %492 = vector.broadcast %490 : f32 to vector<16x16xf32>
      %493 = arith.mulf %492, %491 : vector<16x16xf32>
      %494 = arith.addf %489, %493 : vector<16x16xf32>
      %c60 = arith.constant 60 : index
      %495 = memref.load %arg2[%c60] : memref<98xf32, #tpu.memory_space<smem>>
      %496 = vector.extract_strided_slice %474 {offsets = [0, 4], sizes = [16, 16], strides = [1, 1]} : vector<16x22xf32> to vector<16x16xf32>
      %497 = vector.broadcast %495 : f32 to vector<16x16xf32>
      %498 = arith.mulf %497, %496 : vector<16x16xf32>
      %499 = arith.addf %494, %498 : vector<16x16xf32>
      %c61 = arith.constant 61 : index
      %500 = memref.load %arg2[%c61] : memref<98xf32, #tpu.memory_space<smem>>
      %501 = vector.extract_strided_slice %474 {offsets = [0, 5], sizes = [16, 16], strides = [1, 1]} : vector<16x22xf32> to vector<16x16xf32>
      %502 = vector.broadcast %500 : f32 to vector<16x16xf32>
      %503 = arith.mulf %502, %501 : vector<16x16xf32>
      %504 = arith.addf %499, %503 : vector<16x16xf32>
      %c62 = arith.constant 62 : index
      %505 = memref.load %arg2[%c62] : memref<98xf32, #tpu.memory_space<smem>>
      %506 = vector.extract_strided_slice %474 {offsets = [0, 6], sizes = [16, 16], strides = [1, 1]} : vector<16x22xf32> to vector<16x16xf32>
      %507 = vector.broadcast %505 : f32 to vector<16x16xf32>
      %508 = arith.mulf %507, %506 : vector<16x16xf32>
      %509 = arith.addf %504, %508 : vector<16x16xf32>
      %c1_190 = arith.constant 1 : index
      %c2_191 = arith.constant 2 : index
      %c0_192 = arith.constant 0 : index
      %510 = vector.load %arg7[%c1_190, %c2_191, %c0_192] : memref<2x22x22xf32, #tpu.memory_space<vmem>>, vector<1x16x22xf32>
      %511 = vector.shape_cast %510 : vector<1x16x22xf32> to vector<16x22xf32>
      %c63 = arith.constant 63 : index
      %512 = memref.load %arg2[%c63] : memref<98xf32, #tpu.memory_space<smem>>
      %513 = vector.extract_strided_slice %511 {offsets = [0, 0], sizes = [16, 16], strides = [1, 1]} : vector<16x22xf32> to vector<16x16xf32>
      %514 = vector.broadcast %512 : f32 to vector<16x16xf32>
      %515 = arith.mulf %514, %513 : vector<16x16xf32>
      %516 = arith.addf %509, %515 : vector<16x16xf32>
      %c64_193 = arith.constant 64 : index
      %517 = memref.load %arg2[%c64_193] : memref<98xf32, #tpu.memory_space<smem>>
      %518 = vector.extract_strided_slice %511 {offsets = [0, 1], sizes = [16, 16], strides = [1, 1]} : vector<16x22xf32> to vector<16x16xf32>
      %519 = vector.broadcast %517 : f32 to vector<16x16xf32>
      %520 = arith.mulf %519, %518 : vector<16x16xf32>
      %521 = arith.addf %516, %520 : vector<16x16xf32>
      %c65 = arith.constant 65 : index
      %522 = memref.load %arg2[%c65] : memref<98xf32, #tpu.memory_space<smem>>
      %523 = vector.extract_strided_slice %511 {offsets = [0, 2], sizes = [16, 16], strides = [1, 1]} : vector<16x22xf32> to vector<16x16xf32>
      %524 = vector.broadcast %522 : f32 to vector<16x16xf32>
      %525 = arith.mulf %524, %523 : vector<16x16xf32>
      %526 = arith.addf %521, %525 : vector<16x16xf32>
      %c66 = arith.constant 66 : index
      %527 = memref.load %arg2[%c66] : memref<98xf32, #tpu.memory_space<smem>>
      %528 = vector.extract_strided_slice %511 {offsets = [0, 3], sizes = [16, 16], strides = [1, 1]} : vector<16x22xf32> to vector<16x16xf32>
      %529 = vector.broadcast %527 : f32 to vector<16x16xf32>
      %530 = arith.mulf %529, %528 : vector<16x16xf32>
      %531 = arith.addf %526, %530 : vector<16x16xf32>
      %c67 = arith.constant 67 : index
      %532 = memref.load %arg2[%c67] : memref<98xf32, #tpu.memory_space<smem>>
      %533 = vector.extract_strided_slice %511 {offsets = [0, 4], sizes = [16, 16], strides = [1, 1]} : vector<16x22xf32> to vector<16x16xf32>
      %534 = vector.broadcast %532 : f32 to vector<16x16xf32>
      %535 = arith.mulf %534, %533 : vector<16x16xf32>
      %536 = arith.addf %531, %535 : vector<16x16xf32>
      %c68 = arith.constant 68 : index
      %537 = memref.load %arg2[%c68] : memref<98xf32, #tpu.memory_space<smem>>
      %538 = vector.extract_strided_slice %511 {offsets = [0, 5], sizes = [16, 16], strides = [1, 1]} : vector<16x22xf32> to vector<16x16xf32>
      %539 = vector.broadcast %537 : f32 to vector<16x16xf32>
      %540 = arith.mulf %539, %538 : vector<16x16xf32>
      %541 = arith.addf %536, %540 : vector<16x16xf32>
      %c69 = arith.constant 69 : index
      %542 = memref.load %arg2[%c69] : memref<98xf32, #tpu.memory_space<smem>>
      %543 = vector.extract_strided_slice %511 {offsets = [0, 6], sizes = [16, 16], strides = [1, 1]} : vector<16x22xf32> to vector<16x16xf32>
      %544 = vector.broadcast %542 : f32 to vector<16x16xf32>
      %545 = arith.mulf %544, %543 : vector<16x16xf32>
      %546 = arith.addf %541, %545 : vector<16x16xf32>
      %c1_194 = arith.constant 1 : index
      %c3_195 = arith.constant 3 : index
      %c0_196 = arith.constant 0 : index
      %547 = vector.load %arg7[%c1_194, %c3_195, %c0_196] : memref<2x22x22xf32, #tpu.memory_space<vmem>>, vector<1x16x22xf32>
      %548 = vector.shape_cast %547 : vector<1x16x22xf32> to vector<16x22xf32>
      %c70 = arith.constant 70 : index
      %549 = memref.load %arg2[%c70] : memref<98xf32, #tpu.memory_space<smem>>
      %550 = vector.extract_strided_slice %548 {offsets = [0, 0], sizes = [16, 16], strides = [1, 1]} : vector<16x22xf32> to vector<16x16xf32>
      %551 = vector.broadcast %549 : f32 to vector<16x16xf32>
      %552 = arith.mulf %551, %550 : vector<16x16xf32>
      %553 = arith.addf %546, %552 : vector<16x16xf32>
      %c71 = arith.constant 71 : index
      %554 = memref.load %arg2[%c71] : memref<98xf32, #tpu.memory_space<smem>>
      %555 = vector.extract_strided_slice %548 {offsets = [0, 1], sizes = [16, 16], strides = [1, 1]} : vector<16x22xf32> to vector<16x16xf32>
      %556 = vector.broadcast %554 : f32 to vector<16x16xf32>
      %557 = arith.mulf %556, %555 : vector<16x16xf32>
      %558 = arith.addf %553, %557 : vector<16x16xf32>
      %c72 = arith.constant 72 : index
      %559 = memref.load %arg2[%c72] : memref<98xf32, #tpu.memory_space<smem>>
      %560 = vector.extract_strided_slice %548 {offsets = [0, 2], sizes = [16, 16], strides = [1, 1]} : vector<16x22xf32> to vector<16x16xf32>
      %561 = vector.broadcast %559 : f32 to vector<16x16xf32>
      %562 = arith.mulf %561, %560 : vector<16x16xf32>
      %563 = arith.addf %558, %562 : vector<16x16xf32>
      %c73 = arith.constant 73 : index
      %564 = memref.load %arg2[%c73] : memref<98xf32, #tpu.memory_space<smem>>
      %565 = vector.extract_strided_slice %548 {offsets = [0, 3], sizes = [16, 16], strides = [1, 1]} : vector<16x22xf32> to vector<16x16xf32>
      %566 = vector.broadcast %564 : f32 to vector<16x16xf32>
      %567 = arith.mulf %566, %565 : vector<16x16xf32>
      %568 = arith.addf %563, %567 : vector<16x16xf32>
      %c74 = arith.constant 74 : index
      %569 = memref.load %arg2[%c74] : memref<98xf32, #tpu.memory_space<smem>>
      %570 = vector.extract_strided_slice %548 {offsets = [0, 4], sizes = [16, 16], strides = [1, 1]} : vector<16x22xf32> to vector<16x16xf32>
      %571 = vector.broadcast %569 : f32 to vector<16x16xf32>
      %572 = arith.mulf %571, %570 : vector<16x16xf32>
      %573 = arith.addf %568, %572 : vector<16x16xf32>
      %c75 = arith.constant 75 : index
      %574 = memref.load %arg2[%c75] : memref<98xf32, #tpu.memory_space<smem>>
      %575 = vector.extract_strided_slice %548 {offsets = [0, 5], sizes = [16, 16], strides = [1, 1]} : vector<16x22xf32> to vector<16x16xf32>
      %576 = vector.broadcast %574 : f32 to vector<16x16xf32>
      %577 = arith.mulf %576, %575 : vector<16x16xf32>
      %578 = arith.addf %573, %577 : vector<16x16xf32>
      %c76 = arith.constant 76 : index
      %579 = memref.load %arg2[%c76] : memref<98xf32, #tpu.memory_space<smem>>
      %580 = vector.extract_strided_slice %548 {offsets = [0, 6], sizes = [16, 16], strides = [1, 1]} : vector<16x22xf32> to vector<16x16xf32>
      %581 = vector.broadcast %579 : f32 to vector<16x16xf32>
      %582 = arith.mulf %581, %580 : vector<16x16xf32>
      %583 = arith.addf %578, %582 : vector<16x16xf32>
      %c1_197 = arith.constant 1 : index
      %c4_198 = arith.constant 4 : index
      %c0_199 = arith.constant 0 : index
      %584 = vector.load %arg7[%c1_197, %c4_198, %c0_199] : memref<2x22x22xf32, #tpu.memory_space<vmem>>, vector<1x16x22xf32>
      %585 = vector.shape_cast %584 : vector<1x16x22xf32> to vector<16x22xf32>
      %c77 = arith.constant 77 : index
      %586 = memref.load %arg2[%c77] : memref<98xf32, #tpu.memory_space<smem>>
      %587 = vector.extract_strided_slice %585 {offsets = [0, 0], sizes = [16, 16], strides = [1, 1]} : vector<16x22xf32> to vector<16x16xf32>
      %588 = vector.broadcast %586 : f32 to vector<16x16xf32>
      %589 = arith.mulf %588, %587 : vector<16x16xf32>
      %590 = arith.addf %583, %589 : vector<16x16xf32>
      %c78 = arith.constant 78 : index
      %591 = memref.load %arg2[%c78] : memref<98xf32, #tpu.memory_space<smem>>
      %592 = vector.extract_strided_slice %585 {offsets = [0, 1], sizes = [16, 16], strides = [1, 1]} : vector<16x22xf32> to vector<16x16xf32>
      %593 = vector.broadcast %591 : f32 to vector<16x16xf32>
      %594 = arith.mulf %593, %592 : vector<16x16xf32>
      %595 = arith.addf %590, %594 : vector<16x16xf32>
      %c79 = arith.constant 79 : index
      %596 = memref.load %arg2[%c79] : memref<98xf32, #tpu.memory_space<smem>>
      %597 = vector.extract_strided_slice %585 {offsets = [0, 2], sizes = [16, 16], strides = [1, 1]} : vector<16x22xf32> to vector<16x16xf32>
      %598 = vector.broadcast %596 : f32 to vector<16x16xf32>
      %599 = arith.mulf %598, %597 : vector<16x16xf32>
      %600 = arith.addf %595, %599 : vector<16x16xf32>
      %c80_200 = arith.constant 80 : index
      %601 = memref.load %arg2[%c80_200] : memref<98xf32, #tpu.memory_space<smem>>
      %602 = vector.extract_strided_slice %585 {offsets = [0, 3], sizes = [16, 16], strides = [1, 1]} : vector<16x22xf32> to vector<16x16xf32>
      %603 = vector.broadcast %601 : f32 to vector<16x16xf32>
      %604 = arith.mulf %603, %602 : vector<16x16xf32>
      %605 = arith.addf %600, %604 : vector<16x16xf32>
      %c81 = arith.constant 81 : index
      %606 = memref.load %arg2[%c81] : memref<98xf32, #tpu.memory_space<smem>>
      %607 = vector.extract_strided_slice %585 {offsets = [0, 4], sizes = [16, 16], strides = [1, 1]} : vector<16x22xf32> to vector<16x16xf32>
      %608 = vector.broadcast %606 : f32 to vector<16x16xf32>
      %609 = arith.mulf %608, %607 : vector<16x16xf32>
      %610 = arith.addf %605, %609 : vector<16x16xf32>
      %c82 = arith.constant 82 : index
      %611 = memref.load %arg2[%c82] : memref<98xf32, #tpu.memory_space<smem>>
      %612 = vector.extract_strided_slice %585 {offsets = [0, 5], sizes = [16, 16], strides = [1, 1]} : vector<16x22xf32> to vector<16x16xf32>
      %613 = vector.broadcast %611 : f32 to vector<16x16xf32>
      %614 = arith.mulf %613, %612 : vector<16x16xf32>
      %615 = arith.addf %610, %614 : vector<16x16xf32>
      %c83 = arith.constant 83 : index
      %616 = memref.load %arg2[%c83] : memref<98xf32, #tpu.memory_space<smem>>
      %617 = vector.extract_strided_slice %585 {offsets = [0, 6], sizes = [16, 16], strides = [1, 1]} : vector<16x22xf32> to vector<16x16xf32>
      %618 = vector.broadcast %616 : f32 to vector<16x16xf32>
      %619 = arith.mulf %618, %617 : vector<16x16xf32>
      %620 = arith.addf %615, %619 : vector<16x16xf32>
      %c1_201 = arith.constant 1 : index
      %c5_202 = arith.constant 5 : index
      %c0_203 = arith.constant 0 : index
      %621 = vector.load %arg7[%c1_201, %c5_202, %c0_203] : memref<2x22x22xf32, #tpu.memory_space<vmem>>, vector<1x16x22xf32>
      %622 = vector.shape_cast %621 : vector<1x16x22xf32> to vector<16x22xf32>
      %c84 = arith.constant 84 : index
      %623 = memref.load %arg2[%c84] : memref<98xf32, #tpu.memory_space<smem>>
      %624 = vector.extract_strided_slice %622 {offsets = [0, 0], sizes = [16, 16], strides = [1, 1]} : vector<16x22xf32> to vector<16x16xf32>
      %625 = vector.broadcast %623 : f32 to vector<16x16xf32>
      %626 = arith.mulf %625, %624 : vector<16x16xf32>
      %627 = arith.addf %620, %626 : vector<16x16xf32>
      %c85 = arith.constant 85 : index
      %628 = memref.load %arg2[%c85] : memref<98xf32, #tpu.memory_space<smem>>
      %629 = vector.extract_strided_slice %622 {offsets = [0, 1], sizes = [16, 16], strides = [1, 1]} : vector<16x22xf32> to vector<16x16xf32>
      %630 = vector.broadcast %628 : f32 to vector<16x16xf32>
      %631 = arith.mulf %630, %629 : vector<16x16xf32>
      %632 = arith.addf %627, %631 : vector<16x16xf32>
      %c86 = arith.constant 86 : index
      %633 = memref.load %arg2[%c86] : memref<98xf32, #tpu.memory_space<smem>>
      %634 = vector.extract_strided_slice %622 {offsets = [0, 2], sizes = [16, 16], strides = [1, 1]} : vector<16x22xf32> to vector<16x16xf32>
      %635 = vector.broadcast %633 : f32 to vector<16x16xf32>
      %636 = arith.mulf %635, %634 : vector<16x16xf32>
      %637 = arith.addf %632, %636 : vector<16x16xf32>
      %c87 = arith.constant 87 : index
      %638 = memref.load %arg2[%c87] : memref<98xf32, #tpu.memory_space<smem>>
      %639 = vector.extract_strided_slice %622 {offsets = [0, 3], sizes = [16, 16], strides = [1, 1]} : vector<16x22xf32> to vector<16x16xf32>
      %640 = vector.broadcast %638 : f32 to vector<16x16xf32>
      %641 = arith.mulf %640, %639 : vector<16x16xf32>
      %642 = arith.addf %637, %641 : vector<16x16xf32>
      %c88 = arith.constant 88 : index
      %643 = memref.load %arg2[%c88] : memref<98xf32, #tpu.memory_space<smem>>
      %644 = vector.extract_strided_slice %622 {offsets = [0, 4], sizes = [16, 16], strides = [1, 1]} : vector<16x22xf32> to vector<16x16xf32>
      %645 = vector.broadcast %643 : f32 to vector<16x16xf32>
      %646 = arith.mulf %645, %644 : vector<16x16xf32>
      %647 = arith.addf %642, %646 : vector<16x16xf32>
      %c89 = arith.constant 89 : index
      %648 = memref.load %arg2[%c89] : memref<98xf32, #tpu.memory_space<smem>>
      %649 = vector.extract_strided_slice %622 {offsets = [0, 5], sizes = [16, 16], strides = [1, 1]} : vector<16x22xf32> to vector<16x16xf32>
      %650 = vector.broadcast %648 : f32 to vector<16x16xf32>
      %651 = arith.mulf %650, %649 : vector<16x16xf32>
      %652 = arith.addf %647, %651 : vector<16x16xf32>
      %c90 = arith.constant 90 : index
      %653 = memref.load %arg2[%c90] : memref<98xf32, #tpu.memory_space<smem>>
      %654 = vector.extract_strided_slice %622 {offsets = [0, 6], sizes = [16, 16], strides = [1, 1]} : vector<16x22xf32> to vector<16x16xf32>
      %655 = vector.broadcast %653 : f32 to vector<16x16xf32>
      %656 = arith.mulf %655, %654 : vector<16x16xf32>
      %657 = arith.addf %652, %656 : vector<16x16xf32>
      %c1_204 = arith.constant 1 : index
      %c6_205 = arith.constant 6 : index
      %c0_206 = arith.constant 0 : index
      %658 = vector.load %arg7[%c1_204, %c6_205, %c0_206] : memref<2x22x22xf32, #tpu.memory_space<vmem>>, vector<1x16x22xf32>
      %659 = vector.shape_cast %658 : vector<1x16x22xf32> to vector<16x22xf32>
      %c91 = arith.constant 91 : index
      %660 = memref.load %arg2[%c91] : memref<98xf32, #tpu.memory_space<smem>>
      %661 = vector.extract_strided_slice %659 {offsets = [0, 0], sizes = [16, 16], strides = [1, 1]} : vector<16x22xf32> to vector<16x16xf32>
      %662 = vector.broadcast %660 : f32 to vector<16x16xf32>
      %663 = arith.mulf %662, %661 : vector<16x16xf32>
      %664 = arith.addf %657, %663 : vector<16x16xf32>
      %c92 = arith.constant 92 : index
      %665 = memref.load %arg2[%c92] : memref<98xf32, #tpu.memory_space<smem>>
      %666 = vector.extract_strided_slice %659 {offsets = [0, 1], sizes = [16, 16], strides = [1, 1]} : vector<16x22xf32> to vector<16x16xf32>
      %667 = vector.broadcast %665 : f32 to vector<16x16xf32>
      %668 = arith.mulf %667, %666 : vector<16x16xf32>
      %669 = arith.addf %664, %668 : vector<16x16xf32>
      %c93 = arith.constant 93 : index
      %670 = memref.load %arg2[%c93] : memref<98xf32, #tpu.memory_space<smem>>
      %671 = vector.extract_strided_slice %659 {offsets = [0, 2], sizes = [16, 16], strides = [1, 1]} : vector<16x22xf32> to vector<16x16xf32>
      %672 = vector.broadcast %670 : f32 to vector<16x16xf32>
      %673 = arith.mulf %672, %671 : vector<16x16xf32>
      %674 = arith.addf %669, %673 : vector<16x16xf32>
      %c94 = arith.constant 94 : index
      %675 = memref.load %arg2[%c94] : memref<98xf32, #tpu.memory_space<smem>>
      %676 = vector.extract_strided_slice %659 {offsets = [0, 3], sizes = [16, 16], strides = [1, 1]} : vector<16x22xf32> to vector<16x16xf32>
      %677 = vector.broadcast %675 : f32 to vector<16x16xf32>
      %678 = arith.mulf %677, %676 : vector<16x16xf32>
      %679 = arith.addf %674, %678 : vector<16x16xf32>
      %c95 = arith.constant 95 : index
      %680 = memref.load %arg2[%c95] : memref<98xf32, #tpu.memory_space<smem>>
      %681 = vector.extract_strided_slice %659 {offsets = [0, 4], sizes = [16, 16], strides = [1, 1]} : vector<16x22xf32> to vector<16x16xf32>
      %682 = vector.broadcast %680 : f32 to vector<16x16xf32>
      %683 = arith.mulf %682, %681 : vector<16x16xf32>
      %684 = arith.addf %679, %683 : vector<16x16xf32>
      %c96_207 = arith.constant 96 : index
      %685 = memref.load %arg2[%c96_207] : memref<98xf32, #tpu.memory_space<smem>>
      %686 = vector.extract_strided_slice %659 {offsets = [0, 5], sizes = [16, 16], strides = [1, 1]} : vector<16x22xf32> to vector<16x16xf32>
      %687 = vector.broadcast %685 : f32 to vector<16x16xf32>
      %688 = arith.mulf %687, %686 : vector<16x16xf32>
      %689 = arith.addf %684, %688 : vector<16x16xf32>
      %c97 = arith.constant 97 : index
      %690 = memref.load %arg2[%c97] : memref<98xf32, #tpu.memory_space<smem>>
      %691 = vector.extract_strided_slice %659 {offsets = [0, 6], sizes = [16, 16], strides = [1, 1]} : vector<16x22xf32> to vector<16x16xf32>
      %692 = vector.broadcast %690 : f32 to vector<16x16xf32>
      %693 = arith.mulf %692, %691 : vector<16x16xf32>
      %694 = arith.addf %689, %693 : vector<16x16xf32>
      %695 = arith.negf %694 : vector<16x16xf32>
      %696 = math.exp %695 : vector<16x16xf32>
      %cst_208 = arith.constant 1.000000e+00 : f32
      %697 = vector.broadcast %cst_208 : f32 to vector<16x16xf32>
      %698 = arith.addf %697, %696 : vector<16x16xf32>
      %699 = arith.divf %697, %698 : vector<16x16xf32>
      %c0_209 = arith.constant 0 : index
      %c0_210 = arith.constant 0 : index
      %c0_211 = arith.constant 0 : index
      %c0_212 = arith.constant 0 : index
      %700 = vector.load %arg4[%c0_209, %c0_210, %c0_211, %c0_212] : memref<1x1x16x16xf32, #tpu.memory_space<vmem>>, vector<1x1x16x16xf32>
      %701 = vector.shape_cast %700 : vector<1x1x16x16xf32> to vector<16x16xf32>
      %702 = vector.shape_cast %699 : vector<16x16xf32> to vector<1x1x16x16xf32>
      tpu.vector_store %arg4[%c0_209, %c0_210, %c0_211, %c0_212], %702 {strides = array<i32>} : memref<1x1x16x16xf32, #tpu.memory_space<vmem>>, vector<1x1x16x16xf32>,
    } else {
    }
    return
  }
  func.func @transform_0(%arg0: i32, %arg1: i32) -> i32 {
    %c0_i32 = arith.constant 0 : i32
    %c0_i32_0 = arith.constant 0 : i32
    return %c0_i32 : i32
  }
  func.func @transform_1(%arg0: i32, %arg1: i32) -> (i32, i32, i32) {
    %c0_i32 = arith.constant 0 : i32
    %c0_i32_0 = arith.constant 0 : i32
    return %arg0, %arg1, %c0_i32 : i32, i32, i32
  }
  func.func @transform_2(%arg0: i32, %arg1: i32) -> (i32, i32, i32, i32) {
    %c0_i32 = arith.constant 0 : i32
    %c0_i32_0 = arith.constant 0 : i32
    %c0_i32_1 = arith.constant 0 : i32
    %c0_i32_2 = arith.constant 0 : i32
    return %arg0, %c0_i32, %c0_i32_0, %c0_i32_1 : i32, i32, i32, i32
  }
}

</mosaic_0001>

<llo_original>
// kernel: tpu_custom_call.1
$region0: #{tpu_custom_call.1}
  #allocation0 [shape = 'u32[]', space=smem, size = 0x4, offset = 0x4, fixed_abs, tag = 'smem constant byte address 0x4 - core index']
  #allocation1 [shape = 'u32[144,128]{1,0:T(1,128)}', space=vmem, size = 0x12000, scoped, tag = 'internal scratch']
  #allocation2 [shape = 'f32[1,256]{1,0:T(1,128)}', space=vmem, size = 0x400, scoped, tag = 'scratch operand']
  #allocation3 [shape = 'f32[1,256]{1,0:T(1,128)}', space=vmem, size = 0x400, scoped, tag = 'scratch operand']
  #allocation4 [shape = 'f32[2,22,22]{2,1,0:T(8,128)}', space=vmem, size = 0x6000, scoped, tag = 'scratch operand']
  %s0 = inlined_call_operand.hbm [shape: f32[98], index: 0, kind: input, shape index: {}]
  %s1 = inlined_call_operand.hbm [shape: f32[2,4,256], index: 1, kind: input, shape index: {}]
  %s2 = inlined_call_operand.hbm [shape: f32[2,1,16,16], index: 2, kind: output, shape index: {}]
  %s3 = sld [smem:[#allocation0]]
  $region57: #{tpu_custom_call.1} parent=0
    _
  %s5 = ssub.s32 1, %s3
  %s6 = scalar_select 0, %s5, %s3
  $region1: #{tpu_custom_call.1} parent=0
    #allocation5 [shape = 'u8[512]{0}', space=smem, size = 0x200, scoped, tag = 'input window, operand 0, single buffered']
    #allocation6 [shape = 's32[2]{0}', space=sflag, size = 0x8, scoped, tag = 'scoped memory for tpu_custom_call.1']
    #allocation7 [shape = 's32[2]{0}', space=sflag, size = 0x8, scoped, tag = 'scoped memory for tpu_custom_call.1']
    #allocation8 [shape = 's32[2]{0}', space=sflag, size = 0x8, scoped, tag = 'scoped memory for tpu_custom_call.1']
    #allocation9 [shape = 'u8[8192]{0}', space=vmem, size = 0x2000, scoped, tag = 'input window, operand 1']
    #allocation10 [shape = 'u8[16384]{0}', space=vmem, size = 0x4000, scoped, tag = 'output window, operand 0']
    %7 = vsyncpa [#allocation8], 0
    %8 = vsyncpa [#allocation6], 0
    %s9 = scalar_lea.sflag [#allocation6], 1
    %10 = vsyncpa %s9, 0
    %11 = vsyncpa [#allocation7], 0
    %s12 = scalar_lea.sflag [#allocation7], 1
    %13 = vsyncpa %s12, 0
    loop: start=0, step=1, limit=4
    $region2: #{tpu_custom_call.1} parent=1 // loop_pre_header
      _
    $region3: #{tpu_custom_call.1} parent=1 // loop_header
      %s15 = sphi 0, %s19
      %p16 = scmp.ge.s32.totalorder %s15, 4
      %s22 = sphi 0, %s34
      %s23 = sphi 0, %s30
      %s24 = sphi 0, %s22
      %s25 = sphi 0, %s23
      %s26 = sphi 0, %s24
      %s27 = sphi 0, %s25
      %s35 = sphi 0, %s35
      %s37 = sphi 0, %s35
      %s38 = sphi 0, %s37
      %s52 = sphi 0, %s38
      %s60 = sphi 0, %s62
      %s63 = sphi 0, %s60
      %s64 = sphi 0, %s63
      %s80 = sphi 0, %s64
      %s86 = sphi 0, %s88
      %s89 = sphi 0, %s86
      %s90 = sphi 0, %s89
      %s106 = sphi 0, %s90
    $region4: #{tpu_custom_call.1} parent=1 // loop_header_branch
      %18 = sbr.rel (%p16) target = $region8
    $region5: #{tpu_custom_call.1} parent=1 // loop_body
      %s20 = ssub.s32 %s15, 1
      %s21 = ssub.s32 %s15, 2
      %s28 = sadd.s32 1, %s23
      %p29 = scmp.ge.s32.totalorder %s28, 1
      %s30 = scalar_select %p29, 0, %s28
      %s31 = sadd.s32 1, %s22
      %s32 = scalar_select %p29, %s31, %s22
      %p33 = scmp.ge.s32.totalorder %s32, 2
      %s34 = scalar_select %p33, 0, %s32
      %s36 = sadd.s32 %s35, 1
      %p39 = scmp.eq.s32.totalorder %s15, 1
      %p40 = scmp.ne.s32.totalorder %s35, %s37
      %p41 = scmp.eq.s32.totalorder %s15, 0
      %p42 = por %p40, %p41
      %p43 = scmp.ne.s32.totalorder %s35, %s37
      %p44 = scmp.eq.s32.totalorder %s20, 1
      %p45 = por %p43, %p44
      %p46 = scmp.ne.s32.totalorder %s37, %s38
      %p47 = scmp.eq.s32.totalorder %s20, 0
      %p48 = por %p46, %p47
      %p49 = scmp.ne.s32.totalorder %s37, %s38
      %p50 = scmp.eq.s32.totalorder %s21, 1
      %p51 = por %p49, %p50
      %p53 = scmp.ne.s32.totalorder %s38, %s52
      %p54 = scmp.eq.s32.totalorder %s21, 0
      %p55 = por %p53, %p54
      %s56 = ssub.s32 %s22, %s34
      %s57 = ssub.s32 %s23, %s30
      %s58 = sor.u32 %s56, %s57
      %p59 = scmp.eq.s32.totalorder %s58, 0
      %s61 = sadd.s32 %s60, 1
      %s62 = scalar_select %p59, %s60, %s61
      %p65 = pneg %p59
      %p66 = scmp.eq.s32.totalorder %s15, 1
      %p67 = por %p65, %p66
      %p68 = scmp.ne.s32.totalorder %s60, %s63
      %p69 = scmp.eq.s32.totalorder %s15, 0
      %p70 = por %p68, %p69
      %p71 = scmp.ne.s32.totalorder %s60, %s63
      %p72 = scmp.eq.s32.totalorder %s20, 1
      %p73 = por %p71, %p72
      %p74 = scmp.ne.s32.totalorder %s63, %s64
      %p75 = scmp.eq.s32.totalorder %s20, 0
      %p76 = por %p74, %p75
      %p77 = scmp.ne.s32.totalorder %s63, %s64
      %p78 = scmp.eq.s32.totalorder %s21, 1
      %p79 = por %p77, %p78
      %p81 = scmp.ne.s32.totalorder %s64, %s80
      %p82 = scmp.eq.s32.totalorder %s21, 0
      %p83 = por %p81, %p82
      %s84 = ssub.s32 %s22, %s34
      %p85 = scmp.eq.s32.totalorder %s84, 0
      %s87 = sadd.s32 %s86, 1
      %s88 = scalar_select %p85, %s86, %s87
      %p91 = pneg %p85
      %p92 = scmp.eq.s32.totalorder %s15, 1
      %p93 = por %p91, %p92
      %p94 = scmp.ne.s32.totalorder %s86, %s89
      %p95 = scmp.eq.s32.totalorder %s15, 0
      %p96 = por %p94, %p95
      %p97 = scmp.ne.s32.totalorder %s86, %s89
      %p98 = scmp.eq.s32.totalorder %s20, 1
      %p99 = por %p97, %p98
      %p100 = scmp.ne.s32.totalorder %s89, %s90
      %p101 = scmp.eq.s32.totalorder %s20, 0
      %p102 = por %p100, %p101
      %p103 = scmp.ne.s32.totalorder %s89, %s90
      %p104 = scmp.eq.s32.totalorder %s21, 1
      %p105 = por %p103, %p104
      %p107 = scmp.ne.s32.totalorder %s90, %s106
      %p108 = scmp.eq.s32.totalorder %s21, 0
      %p109 = por %p107, %p108
      %p110 = scmp.le.s32.totalorder 1, %s15
      %p111 = scmp.lt.s32.totalorder %s15, 3
      %p112 = pnand %p110, %p111
      %p113 = pneg %p112
      // Predicated region
      $region9: #{tpu_custom_call.1} parent=5 // pred_check
        _
      $region10: #{tpu_custom_call.1} parent=5 // pred_check_branch
        %115 = sbr.rel (%p112) target = $region12
      $region11: #{tpu_custom_call.1} parent=5 // pred_region
        %s116 = ssub.s32 %s15, 1
        // Predicated region
        $region13: #{tpu_custom_call.1} parent=11 // pred_check
          %p117 = pneg %p48
        $region14: #{tpu_custom_call.1} parent=11 // pred_check_branch
          %119 = sbr.rel (%p117) target = $region16
        $region15: #{tpu_custom_call.1} parent=11 // pred_region
          %s121 = ssub.s32 16, 16
          %122 = vsyncadd [#allocation8], %s121
          %125 = dma.hbm_to_smem %s0, 16, [#allocation5], [#allocation8]
        $region16: #{tpu_custom_call.1} parent=11 // pred_fallthru
          _
      $region12: #{tpu_custom_call.1} parent=5 // pred_fallthru
        _
      %p126 = scmp.lt.s32.totalorder %s15, 2
      // Predicated region
      $region17: #{tpu_custom_call.1} parent=5 // pred_check
        %p127 = pneg %p126
      $region18: #{tpu_custom_call.1} parent=5 // pred_check_branch
        %129 = sbr.rel (%p127) target = $region20
      $region19: #{tpu_custom_call.1} parent=5 // pred_region
        // Predicated region
        $region21: #{tpu_custom_call.1} parent=19 // pred_check
          %p130 = pneg %p70
        $region22: #{tpu_custom_call.1} parent=19 // pred_check_branch
          %132 = sbr.rel (%p130) target = $region24
        $region23: #{tpu_custom_call.1} parent=19 // pred_region
          %s133 = sand.u32 %s60, 1
          %s134 = scalar_lea.sflag [#allocation6], %s133
          %s135 = sand.u32 %s60, 1
          %s136 = smul.addr %s135, 8
          %s137 = scalar_lea.vmem [#allocation9], %s136
          %s139 = ssub.s32 128, 128
          %140 = vsyncadd %s134, %s139
          %s141 = smul.addr %s23, 2
          %s142 = smul.addr %s22, 2
          %s143 = sadd.s32 %s141, %s142
          %s144 = smul.addr %s143, 64
          %s145 = scalar_lea.hbm %s1, %s144
          %s147 = sshll.u32 %s137, 4
          %s148 = int_to_ptr.vmem [resolvable:$true] %s147
          %150 = dma.hbm_to_vmem [thread:$0]  %s145, 128, %s148, %s134
        $region24: #{tpu_custom_call.1} parent=19 // pred_fallthru
          _
      $region20: #{tpu_custom_call.1} parent=5 // pred_fallthru
        _
      %p151 = scmp.le.s32.totalorder 1, %s15
      %p152 = scmp.lt.s32.totalorder %s15, 3
      %p153 = pnand %p151, %p152
      %p154 = pneg %p153
      // Predicated region
      $region25: #{tpu_custom_call.1} parent=5 // pred_check
        _
      $region26: #{tpu_custom_call.1} parent=5 // pred_check_branch
        %156 = sbr.rel (%p153) target = $region28
      $region27: #{tpu_custom_call.1} parent=5 // pred_region
        %s157 = ssub.s32 %s15, 1
        // Predicated region
        $region29: #{tpu_custom_call.1} parent=27 // pred_check
          %p158 = pneg %p48
        $region30: #{tpu_custom_call.1} parent=27 // pred_check_branch
          %160 = sbr.rel (%p158) target = $region32
        $region31: #{tpu_custom_call.1} parent=27 // pred_region
          %161 = dma.done [#allocation8], 16
        $region32: #{tpu_custom_call.1} parent=27 // pred_fallthru
          _
        %s162 = sand.u32 %s63, 1
        %s163 = scalar_lea.sflag [#allocation6], %s162
        %s164 = sand.u32 %s63, 1
        %s165 = smul.addr %s164, 8
        %s166 = scalar_lea.vmem [#allocation9], %s165
        // Predicated region
        $region33: #{tpu_custom_call.1} parent=27 // pred_check
          %p167 = pneg %p76
        $region34: #{tpu_custom_call.1} parent=27 // pred_check_branch
          %169 = sbr.rel (%p167) target = $region36
        $region35: #{tpu_custom_call.1} parent=27 // pred_region
          %170 = dma.done %s163, 128
        $region36: #{tpu_custom_call.1} parent=27 // pred_fallthru
          _
        %171 = sfence
        %p172 = pneg %p48
        %p173 = pneg %p45
        %s174 = sand.u32 %s63, 1
        %s175 = scalar_lea.sflag [#allocation6], %s174
        %s176 = sand.u32 %s63, 1
        %s177 = smul.addr %s176, 8
        %s178 = scalar_lea.vmem [#allocation9], %s177
        %p179 = pneg %p76
        %p180 = pneg %p73
        %p181 = pneg %p102
        %p182 = pneg %p99
        %s183 = sand.u32 %s89, 1
        %s184 = scalar_lea.sflag [#allocation7], %s183
        %s185 = sand.u32 %s89, 1
        %s186 = smul.addr %s185, 16
        %s187 = scalar_lea.vmem [#allocation10], %s186
        %p188 = scmp.eq.s32.totalorder %s25, 0
        // Predicated region
        $region37: #{tpu_custom_call.1} parent=27 // pred_check
          %p189 = pneg %p188
        $region38: #{tpu_custom_call.1} parent=27 // pred_check_branch
          %191 = sbr.rel (%p189) target = $region40
        $region39: #{tpu_custom_call.1} parent=27 // pred_region
          %v192 = vlaneseq
          %vm193 = vcmp.ge.s32.totalorder %v192, 0
          %vm194 = vcmp.lt.s32.totalorder %v192, 256
          %vm195 = vmand %vm193, %vm194
          %196 = vst.msk [vmem:[#allocation2] sm:$0x3] %vm195, 0.0
          %197 = vst.msk [vmem:[#allocation3] sm:$0x3] %vm195, -inf
          %vm198 = vcmask 179200
          %199 = vst.msk [vmem:[#allocation4] sm:$0xff] %vm198, 0.0
          %200 = vst.msk [vmem:[#allocation4 + $0x8] sm:$0xff] %vm198, 0.0
          %vm201 = vcmask 177152
          %202 = vst.msk [vmem:[#allocation4 + $0x10] sm:$0x3f] %vm201, 0.0
          %203 = vst.msk [vmem:[#allocation4 + $0x18] sm:$0xff] %vm198, 0.0
          %204 = vst.msk [vmem:[#allocation4 + $0x20] sm:$0xff] %vm198, 0.0
          %205 = vst.msk [vmem:[#allocation4 + $0x28] sm:$0x3f] %vm201, 0.0
        $region40: #{tpu_custom_call.1} parent=27 // pred_fallthru
          _
        %v206 = vld [vmem:[%s166] sm:$0xff]
        %v207 = vld [vmem:[#allocation2] sm:$0x3]
        %v209 = vcombine.high %v206, %v206
        %vm211 = vcmask 1043456
        %v212 = vsel %vm211, %v206, 0.0
        %v213 = vrot.slane %v212, 4
        %v214 = vadd.f32 %v212, %v213
        %v215 = vrot.slane %v214, 2
        %v216 = vadd.f32 %v214, %v215
        %v217 = vrot.slane %v216, 1
        %v218 = vadd.f32 %v216, %v217
        %v219 = vsel %vm211, %v209, 0.0
        %v220 = vrot.slane %v219, 4
        %v221 = vadd.f32 %v219, %v220
        %v222 = vrot.slane %v221, 2
        %v223 = vadd.f32 %v221, %v222
        %v224 = vrot.slane %v223, 1
        %v225 = vadd.f32 %v223, %v224
        %v228 = vcombine.low %v218, %v225
        %v230 = vunpack.c.l.s4 1966171168
        %v231 = vunpack.c.0.s8 %v230
        %v232 = vlaneseq
        %v233 = vshrl.u32 %v232, 7
        %v234 = vsub.s32 %v231, %v233
        %v235 = vrot.slane %v228, %v234
        %v237 = vunpack.c.l.s4 1966171168
        %v238 = vunpack.c.0.s8 %v237
        %v239 = vlaneseq
        %v240 = vshrl.u32 %v239, 7
        %v241 = vsub.s32 %v238, %v240
        %v242 = vrot.slane %v235, %v241
        %v244 = vadd.f32 %v207, %v242
        %v245 = vlaneseq
        %vm246 = vcmp.ge.s32.totalorder %v245, 0
        %vm247 = vcmp.lt.s32.totalorder %v245, 256
        %vm248 = vmand %vm246, %vm247
        %249 = vst.msk [vmem:[#allocation2] sm:$0x3] %vm248, %v244
        %v250 = vld [vmem:[#allocation3] sm:$0x3]
        %v251 = vsel %vm211, %v206, -inf
        %v252 = vrot.slane %v251, 4
        %v253 = vmax.f32 %v251, %v252
        %v254 = vrot.slane %v253, 2
        %v255 = vmax.f32 %v253, %v254
        %v256 = vrot.slane %v255, 1
        %v257 = vmax.f32 %v255, %v256
        %v258 = vsel %vm211, %v209, -inf
        %v259 = vrot.slane %v258, 4
        %v260 = vmax.f32 %v258, %v259
        %v261 = vrot.slane %v260, 2
        %v262 = vmax.f32 %v260, %v261
        %v263 = vrot.slane %v262, 1
        %v264 = vmax.f32 %v262, %v263
        %v267 = vcombine.low %v257, %v264
        %v269 = vunpack.c.l.s4 1966171168
        %v270 = vunpack.c.0.s8 %v269
        %v271 = vlaneseq
        %v272 = vshrl.u32 %v271, 7
        %v273 = vsub.s32 %v270, %v272
        %v274 = vrot.slane %v267, %v273
        %v276 = vunpack.c.l.s4 1966171168
        %v277 = vunpack.c.0.s8 %v276
        %v278 = vlaneseq
        %v279 = vshrl.u32 %v278, 7
        %v280 = vsub.s32 %v277, %v279
        %v281 = vrot.slane %v274, %v280
        %v283 = vmax.f32 %v250, %v281
        %284 = vst.msk [vmem:[#allocation3] sm:$0x3] %vm248, %v283
        // Predicated region
        $region41: #{tpu_custom_call.1} parent=27 // pred_check
          %p285 = pneg %p188
        $region42: #{tpu_custom_call.1} parent=27 // pred_check_branch
          %287 = sbr.rel (%p285) target = $region44
        $region43: #{tpu_custom_call.1} parent=27 // pred_region
          %v288 = vld [vmem:[#allocation2] sm:$0x1]
          %v290 = vlaneseq
          %v291 = vshrl.u32 %v290, 7
          %v292 = vsub.s32 0, %v291
          %v293 = vrot.slane %v288, %v292
          %294 = vrot.lane.b32.xlu0 %v293, 3
          %v295 = vpop.permute.xlu0 %294
          %vm297 = vcmask 147480
          %298 = vst.msk [vmem:[#allocation4 + $0x3] sm:$0x1] %vm297, %v295
          %v299 = vld [vmem:[#allocation3] sm:$0x1]
          %v301 = vlaneseq
          %v302 = vshrl.u32 %v301, 7
          %v303 = vsub.s32 0, %v302
          %v304 = vrot.slane %v299, %v303
          %305 = vrot.lane.b32.xlu0 %v304, 3
          %v306 = vpop.permute.xlu0 %305
          %s308 = scalar_lea.vmem [#allocation4], 24
          %309 = vst.msk [vmem:[%s308 + $0x3] sm:$0x1] %vm297, %v306
          %v310 = vld [vmem:[#allocation2] sm:$0x1]
          %v312 = vlaneseq
          %v313 = vshrl.u32 %v312, 7
          %v314 = vsub.s32 0, %v313
          %v315 = vrot.slane %v310, %v314
          %316 = vrot.lane.b32.xlu0 %v315, 115
          %v317 = vpop.permute.xlu0 %316
          %319 = vst.msk [vmem:[#allocation4 + $0x4] sm:$0x1] %vm297, %v317
          %v320 = vld [vmem:[#allocation3] sm:$0x1]
          %v322 = vlaneseq
          %v323 = vshrl.u32 %v322, 7
          %v324 = vsub.s32 0, %v323
          %v325 = vrot.slane %v320, %v324
          %326 = vrot.lane.b32.xlu0 %v325, 115
          %v327 = vpop.permute.xlu0 %326
          %329 = vst.msk [vmem:[%s308 + $0x4] sm:$0x1] %vm297, %v327
          %v330 = vld [vmem:[#allocation2] sm:$0x1]
          %v332 = vlaneseq
          %v333 = vshrl.u32 %v332, 7
          %v334 = vsub.s32 0, %v333
          %v335 = vrot.slane %v330, %v334
          %336 = vrot.lane.b32.xlu0 %v335, 99
          %v337 = vpop.permute.xlu0 %336
          %339 = vst.msk [vmem:[#allocation4 + $0x5] sm:$0x1] %vm297, %v337
          %v340 = vld [vmem:[#allocation3] sm:$0x1]
          %v342 = vlaneseq
          %v343 = vshrl.u32 %v342, 7
          %v344 = vsub.s32 0, %v343
          %v345 = vrot.slane %v340, %v344
          %346 = vrot.lane.b32.xlu0 %v345, 99
          %v347 = vpop.permute.xlu0 %346
          %349 = vst.msk [vmem:[%s308 + $0x5] sm:$0x1] %vm297, %v347
          %v350 = vld [vmem:[#allocation2] sm:$0x1]
          %v352 = vlaneseq
          %v353 = vshrl.u32 %v352, 7
          %v354 = vsub.s32 0, %v353
          %v355 = vrot.slane %v350, %v354
          %356 = vrot.lane.b32.xlu0 %v355, 83
          %v357 = vpop.permute.xlu0 %356
          %359 = vst.msk [vmem:[#allocation4 + $0x6] sm:$0x1] %vm297, %v357
          %v360 = vld [vmem:[#allocation3] sm:$0x1]
          %v362 = vlaneseq
          %v363 = vshrl.u32 %v362, 7
          %v364 = vsub.s32 0, %v363
          %v365 = vrot.slane %v360, %v364
          %366 = vrot.lane.b32.xlu0 %v365, 83
          %v367 = vpop.permute.xlu0 %366
          %369 = vst.msk [vmem:[%s308 + $0x6] sm:$0x1] %vm297, %v367
          %v370 = vld [vmem:[#allocation2] sm:$0x1]
          %v372 = vlaneseq
          %v373 = vshrl.u32 %v372, 7
          %v374 = vsub.s32 0, %v373
          %v375 = vrot.slane %v370, %v374
          %376 = vrot.lane.b32.xlu0 %v375, 67
          %v377 = vpop.permute.xlu0 %376
          %379 = vst.msk [vmem:[#allocation4 + $0x7] sm:$0x1] %vm297, %v377
          %v380 = vld [vmem:[#allocation3] sm:$0x1]
          %v382 = vlaneseq
          %v383 = vshrl.u32 %v382, 7
          %v384 = vsub.s32 0, %v383
          %v385 = vrot.slane %v380, %v384
          %386 = vrot.lane.b32.xlu0 %v385, 67
          %v387 = vpop.permute.xlu0 %386
          %389 = vst.msk [vmem:[%s308 + $0x7] sm:$0x1] %vm297, %v387
          %v390 = vld [vmem:[#allocation2] sm:$0x1]
          %v392 = vlaneseq
          %v393 = vshrl.u32 %v392, 7
          %v394 = vsub.s32 0, %v393
          %v395 = vrot.slane %v390, %v394
          %396 = vrot.lane.b32.xlu0 %v395, 51
          %v397 = vpop.permute.xlu0 %396
          %399 = vst.msk [vmem:[#allocation4 + $0x8] sm:$0x1] %vm297, %v397
          %v400 = vld [vmem:[#allocation3] sm:$0x1]
          %v402 = vlaneseq
          %v403 = vshrl.u32 %v402, 7
          %v404 = vsub.s32 0, %v403
          %v405 = vrot.slane %v400, %v404
          %406 = vrot.lane.b32.xlu0 %v405, 51
          %v407 = vpop.permute.xlu0 %406
          %409 = vst.msk [vmem:[%s308 + $0x8] sm:$0x1] %vm297, %v407
          %v410 = vld [vmem:[#allocation2] sm:$0x1]
          %v412 = vlaneseq
          %v413 = vshrl.u32 %v412, 7
          %v414 = vsub.s32 0, %v413
          %v415 = vrot.slane %v410, %v414
          %416 = vrot.lane.b32.xlu0 %v415, 35
          %v417 = vpop.permute.xlu0 %416
          %419 = vst.msk [vmem:[#allocation4 + $0x9] sm:$0x1] %vm297, %v417
          %v420 = vld [vmem:[#allocation3] sm:$0x1]
          %v422 = vlaneseq
          %v423 = vshrl.u32 %v422, 7
          %v424 = vsub.s32 0, %v423
          %v425 = vrot.slane %v420, %v424
          %426 = vrot.lane.b32.xlu0 %v425, 35
          %v427 = vpop.permute.xlu0 %426
          %429 = vst.msk [vmem:[%s308 + $0x9] sm:$0x1] %vm297, %v427
          %v430 = vld [vmem:[#allocation2] sm:$0x1]
          %v432 = vlaneseq
          %v433 = vshrl.u32 %v432, 7
          %v434 = vsub.s32 0, %v433
          %v435 = vrot.slane %v430, %v434
          %436 = vrot.lane.b32.xlu0 %v435, 19
          %v437 = vpop.permute.xlu0 %436
          %439 = vst.msk [vmem:[#allocation4 + $0xa] sm:$0x1] %vm297, %v437
          %v440 = vld [vmem:[#allocation3] sm:$0x1]
          %v442 = vlaneseq
          %v443 = vshrl.u32 %v442, 7
          %v444 = vsub.s32 0, %v443
          %v445 = vrot.slane %v440, %v444
          %446 = vrot.lane.b32.xlu0 %v445, 19
          %v447 = vpop.permute.xlu0 %446
          %449 = vst.msk [vmem:[%s308 + $0xa] sm:$0x1] %vm297, %v447
          %v450 = vld [vmem:[#allocation2 + $0x1] sm:$0x1]
          %v452 = vlaneseq
          %v453 = vshrl.u32 %v452, 7
          %v454 = vsub.s32 0, %v453
          %v455 = vrot.slane %v450, %v454
          %456 = vrot.lane.b32.xlu0 %v455, 3
          %v457 = vpop.permute.xlu0 %456
          %459 = vst.msk [vmem:[#allocation4 + $0xb] sm:$0x1] %vm297, %v457
          %v460 = vld [vmem:[#allocation3 + $0x1] sm:$0x1]
          %v462 = vlaneseq
          %v463 = vshrl.u32 %v462, 7
          %v464 = vsub.s32 0, %v463
          %v465 = vrot.slane %v460, %v464
          %466 = vrot.lane.b32.xlu0 %v465, 3
          %v467 = vpop.permute.xlu0 %466
          %469 = vst.msk [vmem:[%s308 + $0xb] sm:$0x1] %vm297, %v467
          %v470 = vld [vmem:[#allocation2 + $0x1] sm:$0x1]
          %v472 = vlaneseq
          %v473 = vshrl.u32 %v472, 7
          %v474 = vsub.s32 0, %v473
          %v475 = vrot.slane %v470, %v474
          %476 = vrot.lane.b32.xlu0 %v475, 115
          %v477 = vpop.permute.xlu0 %476
          %479 = vst.msk [vmem:[#allocation4 + $0xc] sm:$0x1] %vm297, %v477
          %v480 = vld [vmem:[#allocation3 + $0x1] sm:$0x1]
          %v482 = vlaneseq
          %v483 = vshrl.u32 %v482, 7
          %v484 = vsub.s32 0, %v483
          %v485 = vrot.slane %v480, %v484
          %486 = vrot.lane.b32.xlu0 %v485, 115
          %v487 = vpop.permute.xlu0 %486
          %489 = vst.msk [vmem:[%s308 + $0xc] sm:$0x1] %vm297, %v487
          %v490 = vld [vmem:[#allocation2 + $0x1] sm:$0x1]
          %v492 = vlaneseq
          %v493 = vshrl.u32 %v492, 7
          %v494 = vsub.s32 0, %v493
          %v495 = vrot.slane %v490, %v494
          %496 = vrot.lane.b32.xlu0 %v495, 99
          %v497 = vpop.permute.xlu0 %496
          %499 = vst.msk [vmem:[#allocation4 + $0xd] sm:$0x1] %vm297, %v497
          %v500 = vld [vmem:[#allocation3 + $0x1] sm:$0x1]
          %v502 = vlaneseq
          %v503 = vshrl.u32 %v502, 7
          %v504 = vsub.s32 0, %v503
          %v505 = vrot.slane %v500, %v504
          %506 = vrot.lane.b32.xlu0 %v505, 99
          %v507 = vpop.permute.xlu0 %506
          %509 = vst.msk [vmem:[%s308 + $0xd] sm:$0x1] %vm297, %v507
          %v510 = vld [vmem:[#allocation2 + $0x1] sm:$0x1]
          %v512 = vlaneseq
          %v513 = vshrl.u32 %v512, 7
          %v514 = vsub.s32 0, %v513
          %v515 = vrot.slane %v510, %v514
          %516 = vrot.lane.b32.xlu0 %v515, 83
          %v517 = vpop.permute.xlu0 %516
          %519 = vst.msk [vmem:[#allocation4 + $0xe] sm:$0x1] %vm297, %v517
          %v520 = vld [vmem:[#allocation3 + $0x1] sm:$0x1]
          %v522 = vlaneseq
          %v523 = vshrl.u32 %v522, 7
          %v524 = vsub.s32 0, %v523
          %v525 = vrot.slane %v520, %v524
          %526 = vrot.lane.b32.xlu0 %v525, 83
          %v527 = vpop.permute.xlu0 %526
          %529 = vst.msk [vmem:[%s308 + $0xe] sm:$0x1] %vm297, %v527
          %v530 = vld [vmem:[#allocation2 + $0x1] sm:$0x1]
          %v532 = vlaneseq
          %v533 = vshrl.u32 %v532, 7
          %v534 = vsub.s32 0, %v533
          %v535 = vrot.slane %v530, %v534
          %536 = vrot.lane.b32.xlu0 %v535, 67
          %v537 = vpop.permute.xlu0 %536
          %539 = vst.msk [vmem:[#allocation4 + $0xf] sm:$0x1] %vm297, %v537
          %v540 = vld [vmem:[#allocation3 + $0x1] sm:$0x1]
          %v542 = vlaneseq
          %v543 = vshrl.u32 %v542, 7
          %v544 = vsub.s32 0, %v543
          %v545 = vrot.slane %v540, %v544
          %546 = vrot.lane.b32.xlu0 %v545, 67
          %v547 = vpop.permute.xlu0 %546
          %549 = vst.msk [vmem:[%s308 + $0xf] sm:$0x1] %vm297, %v547
          %v550 = vld [vmem:[#allocation2 + $0x1] sm:$0x1]
          %v552 = vlaneseq
          %v553 = vshrl.u32 %v552, 7
          %v554 = vsub.s32 0, %v553
          %v555 = vrot.slane %v550, %v554
          %556 = vrot.lane.b32.xlu0 %v555, 51
          %v557 = vpop.permute.xlu0 %556
          %559 = vst.msk [vmem:[#allocation4 + $0x10] sm:$0x1] %vm297, %v557
          %v560 = vld [vmem:[#allocation3 + $0x1] sm:$0x1]
          %v562 = vlaneseq
          %v563 = vshrl.u32 %v562, 7
          %v564 = vsub.s32 0, %v563
          %v565 = vrot.slane %v560, %v564
          %566 = vrot.lane.b32.xlu0 %v565, 51
          %v567 = vpop.permute.xlu0 %566
          %569 = vst.msk [vmem:[%s308 + $0x10] sm:$0x1] %vm297, %v567
          %v570 = vld [vmem:[#allocation2 + $0x1] sm:$0x1]
          %v572 = vlaneseq
          %v573 = vshrl.u32 %v572, 7
          %v574 = vsub.s32 0, %v573
          %v575 = vrot.slane %v570, %v574
          %576 = vrot.lane.b32.xlu0 %v575, 35
          %v577 = vpop.permute.xlu0 %576
          %579 = vst.msk [vmem:[#allocation4 + $0x11] sm:$0x1] %vm297, %v577
          %v580 = vld [vmem:[#allocation3 + $0x1] sm:$0x1]
          %v582 = vlaneseq
          %v583 = vshrl.u32 %v582, 7
          %v584 = vsub.s32 0, %v583
          %v585 = vrot.slane %v580, %v584
          %586 = vrot.lane.b32.xlu0 %v585, 35
          %v587 = vpop.permute.xlu0 %586
          %589 = vst.msk [vmem:[%s308 + $0x11] sm:$0x1] %vm297, %v587
          %v590 = vld [vmem:[#allocation2 + $0x1] sm:$0x1]
          %v592 = vlaneseq
          %v593 = vshrl.u32 %v592, 7
          %v594 = vsub.s32 0, %v593
          %v595 = vrot.slane %v590, %v594
          %596 = vrot.lane.b32.xlu0 %v595, 19
          %v597 = vpop.permute.xlu0 %596
          %599 = vst.msk [vmem:[#allocation4 + $0x12] sm:$0x1] %vm297, %v597
          %v600 = vld [vmem:[#allocation3 + $0x1] sm:$0x1]
          %v602 = vlaneseq
          %v603 = vshrl.u32 %v602, 7
          %v604 = vsub.s32 0, %v603
          %v605 = vrot.slane %v600, %v604
          %606 = vrot.lane.b32.xlu0 %v605, 19
          %v607 = vpop.permute.xlu0 %606
          %609 = vst.msk [vmem:[%s308 + $0x12] sm:$0x1] %vm297, %v607
          %v610 = vld [vmem:[#allocation4] sm:$0xff]
          %v611 = vld [vmem:[#allocation4 + $0x8] sm:$0xff]
          %s612 = sld [smem:[#allocation5]]
          %v613 = vstv %s612
          %v614 = vmul.f32 %v613, %v610
          %v615 = vmul.f32 %v613, %v611
          %s616 = sld [smem:[#allocation5 + $0x1]]
          %v617 = vstv %s616
          %v618 = vmul.f32 %v617, %v610
          %v619 = vmul.f32 %v617, %v611
          %622 = vrot.lane.b32.xlu0 %v618, 127
          %v623 = vpop.permute.xlu0 %622
          %624 = vrot.lane.b32.xlu0 %v619, 127
          %v625 = vpop.permute.xlu0 %624
          %v628 = vadd.f32 %v614, %v623
          %v629 = vadd.f32 %v615, %v625
          %s630 = sld [smem:[#allocation5 + $0x2]]
          %v631 = vstv %s630
          %v632 = vmul.f32 %v631, %v610
          %v633 = vmul.f32 %v631, %v611
          %636 = vrot.lane.b32.xlu0 %v632, 126
          %v637 = vpop.permute.xlu0 %636
          %638 = vrot.lane.b32.xlu0 %v633, 126
          %v639 = vpop.permute.xlu0 %638
          %v642 = vadd.f32 %v628, %v637
          %v643 = vadd.f32 %v629, %v639
          %s644 = sld [smem:[#allocation5 + $0x3]]
          %v645 = vstv %s644
          %v646 = vmul.f32 %v645, %v610
          %v647 = vmul.f32 %v645, %v611
          %650 = vrot.lane.b32.xlu0 %v646, 125
          %v651 = vpop.permute.xlu0 %650
          %652 = vrot.lane.b32.xlu0 %v647, 125
          %v653 = vpop.permute.xlu0 %652
          %v656 = vadd.f32 %v642, %v651
          %v657 = vadd.f32 %v643, %v653
          %s658 = sld [smem:[#allocation5 + $0x4]]
          %v659 = vstv %s658
          %v660 = vmul.f32 %v659, %v610
          %v661 = vmul.f32 %v659, %v611
          %664 = vrot.lane.b32.xlu0 %v660, 124
          %v665 = vpop.permute.xlu0 %664
          %666 = vrot.lane.b32.xlu0 %v661, 124
          %v667 = vpop.permute.xlu0 %666
          %v670 = vadd.f32 %v656, %v665
          %v671 = vadd.f32 %v657, %v667
          %s672 = sld [smem:[#allocation5 + $0x5]]
          %v673 = vstv %s672
          %v674 = vmul.f32 %v673, %v610
          %v675 = vmul.f32 %v673, %v611
          %678 = vrot.lane.b32.xlu0 %v674, 123
          %v679 = vpop.permute.xlu0 %678
          %680 = vrot.lane.b32.xlu0 %v675, 123
          %v681 = vpop.permute.xlu0 %680
          %v684 = vadd.f32 %v670, %v679
          %v685 = vadd.f32 %v671, %v681
          %s686 = sld [smem:[#allocation5 + $0x6]]
          %v687 = vstv %s686
          %v688 = vmul.f32 %v687, %v610
          %v689 = vmul.f32 %v687, %v611
          %692 = vrot.lane.b32.xlu0 %v688, 122
          %v693 = vpop.permute.xlu0 %692
          %694 = vrot.lane.b32.xlu0 %v689, 122
          %v695 = vpop.permute.xlu0 %694
          %v698 = vadd.f32 %v684, %v693
          %v699 = vadd.f32 %v685, %v695
          %v700 = vld [vmem:[#allocation4 + $0x1] sm:$0xff]
          %v701 = vld [vmem:[#allocation4 + $0x9] sm:$0xff]
          %s702 = sld [smem:[#allocation5 + $0x7]]
          %v703 = vstv %s702
          %v704 = vmul.f32 %v703, %v700
          %v705 = vmul.f32 %v703, %v701
          %v706 = vadd.f32 %v698, %v704
          %v707 = vadd.f32 %v699, %v705
          %s708 = sld [smem:[#allocation5 + $0x8]]
          %v709 = vstv %s708
          %v710 = vmul.f32 %v709, %v700
          %v711 = vmul.f32 %v709, %v701
          %714 = vrot.lane.b32.xlu0 %v710, 127
          %v715 = vpop.permute.xlu0 %714
          %716 = vrot.lane.b32.xlu0 %v711, 127
          %v717 = vpop.permute.xlu0 %716
          %v720 = vadd.f32 %v706, %v715
          %v721 = vadd.f32 %v707, %v717
          %s722 = sld [smem:[#allocation5 + $0x9]]
          %v723 = vstv %s722
          %v724 = vmul.f32 %v723, %v700
          %v725 = vmul.f32 %v723, %v701
          %728 = vrot.lane.b32.xlu0 %v724, 126
          %v729 = vpop.permute.xlu0 %728
          %730 = vrot.lane.b32.xlu0 %v725, 126
          %v731 = vpop.permute.xlu0 %730
          %v734 = vadd.f32 %v720, %v729
          %v735 = vadd.f32 %v721, %v731
          %s736 = sld [smem:[#allocation5 + $0xa]]
          %v737 = vstv %s736
          %v738 = vmul.f32 %v737, %v700
          %v739 = vmul.f32 %v737, %v701
          %742 = vrot.lane.b32.xlu0 %v738, 125
          %v743 = vpop.permute.xlu0 %742
          %744 = vrot.lane.b32.xlu0 %v739, 125
          %v745 = vpop.permute.xlu0 %744
          %v748 = vadd.f32 %v734, %v743
          %v749 = vadd.f32 %v735, %v745
          %s750 = sld [smem:[#allocation5 + $0xb]]
          %v751 = vstv %s750
          %v752 = vmul.f32 %v751, %v700
          %v753 = vmul.f32 %v751, %v701
          %756 = vrot.lane.b32.xlu0 %v752, 124
          %v757 = vpop.permute.xlu0 %756
          %758 = vrot.lane.b32.xlu0 %v753, 124
          %v759 = vpop.permute.xlu0 %758
          %v762 = vadd.f32 %v748, %v757
          %v763 = vadd.f32 %v749, %v759
          %s764 = sld [smem:[#allocation5 + $0xc]]
          %v765 = vstv %s764
          %v766 = vmul.f32 %v765, %v700
          %v767 = vmul.f32 %v765, %v701
          %770 = vrot.lane.b32.xlu0 %v766, 123
          %v771 = vpop.permute.xlu0 %770
          %772 = vrot.lane.b32.xlu0 %v767, 123
          %v773 = vpop.permute.xlu0 %772
          %v776 = vadd.f32 %v762, %v771
          %v777 = vadd.f32 %v763, %v773
          %s778 = sld [smem:[#allocation5 + $0xd]]
          %v779 = vstv %s778
          %v780 = vmul.f32 %v779, %v700
          %v781 = vmul.f32 %v779, %v701
          %784 = vrot.lane.b32.xlu0 %v780, 122
          %v785 = vpop.permute.xlu0 %784
          %786 = vrot.lane.b32.xlu0 %v781, 122
          %v787 = vpop.permute.xlu0 %786
          %v790 = vadd.f32 %v776, %v785
          %v791 = vadd.f32 %v777, %v787
          %v792 = vld [vmem:[#allocation4 + $0x2] sm:$0xff]
          %v793 = vld [vmem:[#allocation4 + $0xa] sm:$0xff]
          %s794 = sld [smem:[#allocation5 + $0xe]]
          %v795 = vstv %s794
          %v796 = vmul.f32 %v795, %v792
          %v797 = vmul.f32 %v795, %v793
          %v798 = vadd.f32 %v790, %v796
          %v799 = vadd.f32 %v791, %v797
          %s800 = sld [smem:[#allocation5 + $0xf]]
          %v801 = vstv %s800
          %v802 = vmul.f32 %v801, %v792
          %v803 = vmul.f32 %v801, %v793
          %806 = vrot.lane.b32.xlu0 %v802, 127
          %v807 = vpop.permute.xlu0 %806
          %808 = vrot.lane.b32.xlu0 %v803, 127
          %v809 = vpop.permute.xlu0 %808
          %v812 = vadd.f32 %v798, %v807
          %v813 = vadd.f32 %v799, %v809
          %s814 = sld [smem:[#allocation5 + $0x10]]
          %v815 = vstv %s814
          %v816 = vmul.f32 %v815, %v792
          %v817 = vmul.f32 %v815, %v793
          %820 = vrot.lane.b32.xlu0 %v816, 126
          %v821 = vpop.permute.xlu0 %820
          %822 = vrot.lane.b32.xlu0 %v817, 126
          %v823 = vpop.permute.xlu0 %822
          %v826 = vadd.f32 %v812, %v821
          %v827 = vadd.f32 %v813, %v823
          %s828 = sld [smem:[#allocation5 + $0x11]]
          %v829 = vstv %s828
          %v830 = vmul.f32 %v829, %v792
          %v831 = vmul.f32 %v829, %v793
          %834 = vrot.lane.b32.xlu0 %v830, 125
          %v835 = vpop.permute.xlu0 %834
          %836 = vrot.lane.b32.xlu0 %v831, 125
          %v837 = vpop.permute.xlu0 %836
          %v840 = vadd.f32 %v826, %v835
          %v841 = vadd.f32 %v827, %v837
          %s842 = sld [smem:[#allocation5 + $0x12]]
          %v843 = vstv %s842
          %v844 = vmul.f32 %v843, %v792
          %v845 = vmul.f32 %v843, %v793
          %848 = vrot.lane.b32.xlu0 %v844, 124
          %v849 = vpop.permute.xlu0 %848
          %850 = vrot.lane.b32.xlu0 %v845, 124
          %v851 = vpop.permute.xlu0 %850
          %v854 = vadd.f32 %v840, %v849
          %v855 = vadd.f32 %v841, %v851
          %s856 = sld [smem:[#allocation5 + $0x13]]
          %v857 = vstv %s856
          %v858 = vmul.f32 %v857, %v792
          %v859 = vmul.f32 %v857, %v793
          %862 = vrot.lane.b32.xlu0 %v858, 123
          %v863 = vpop.permute.xlu0 %862
          %864 = vrot.lane.b32.xlu0 %v859, 123
          %v865 = vpop.permute.xlu0 %864
          %v868 = vadd.f32 %v854, %v863
          %v869 = vadd.f32 %v855, %v865
          %s870 = sld [smem:[#allocation5 + $0x14]]
          %v871 = vstv %s870
          %v872 = vmul.f32 %v871, %v792
          %v873 = vmul.f32 %v871, %v793
          %876 = vrot.lane.b32.xlu0 %v872, 122
          %v877 = vpop.permute.xlu0 %876
          %878 = vrot.lane.b32.xlu0 %v873, 122
          %v879 = vpop.permute.xlu0 %878
          %v882 = vadd.f32 %v868, %v877
          %v883 = vadd.f32 %v869, %v879
          %v884 = vld [vmem:[#allocation4 + $0x3] sm:$0xff]
          %v885 = vld [vmem:[#allocation4 + $0xb] sm:$0xff]
          %s886 = sld [smem:[#allocation5 + $0x15]]
          %v887 = vstv %s886
          %v888 = vmul.f32 %v887, %v884
          %v889 = vmul.f32 %v887, %v885
          %v890 = vadd.f32 %v882, %v888
          %v891 = vadd.f32 %v883, %v889
          %s892 = sld [smem:[#allocation5 + $0x16]]
          %v893 = vstv %s892
          %v894 = vmul.f32 %v893, %v884
          %v895 = vmul.f32 %v893, %v885
          %898 = vrot.lane.b32.xlu0 %v894, 127
          %v899 = vpop.permute.xlu0 %898
          %900 = vrot.lane.b32.xlu0 %v895, 127
          %v901 = vpop.permute.xlu0 %900
          %v904 = vadd.f32 %v890, %v899
          %v905 = vadd.f32 %v891, %v901
          %s906 = sld [smem:[#allocation5 + $0x17]]
          %v907 = vstv %s906
          %v908 = vmul.f32 %v907, %v884
          %v909 = vmul.f32 %v907, %v885
          %912 = vrot.lane.b32.xlu0 %v908, 126
          %v913 = vpop.permute.xlu0 %912
          %914 = vrot.lane.b32.xlu0 %v909, 126
          %v915 = vpop.permute.xlu0 %914
          %v918 = vadd.f32 %v904, %v913
          %v919 = vadd.f32 %v905, %v915
          %s920 = sld [smem:[#allocation5 + $0x18]]
          %v921 = vstv %s920
          %v922 = vmul.f32 %v921, %v884
          %v923 = vmul.f32 %v921, %v885
          %926 = vrot.lane.b32.xlu0 %v922, 125
          %v927 = vpop.permute.xlu0 %926
          %928 = vrot.lane.b32.xlu0 %v923, 125
          %v929 = vpop.permute.xlu0 %928
          %v932 = vadd.f32 %v918, %v927
          %v933 = vadd.f32 %v919, %v929
          %s934 = sld [smem:[#allocation5 + $0x19]]
          %v935 = vstv %s934
          %v936 = vmul.f32 %v935, %v884
          %v937 = vmul.f32 %v935, %v885
          %940 = vrot.lane.b32.xlu0 %v936, 124
          %v941 = vpop.permute.xlu0 %940
          %942 = vrot.lane.b32.xlu0 %v937, 124
          %v943 = vpop.permute.xlu0 %942
          %v946 = vadd.f32 %v932, %v941
          %v947 = vadd.f32 %v933, %v943
          %s948 = sld [smem:[#allocation5 + $0x1a]]
          %v949 = vstv %s948
          %v950 = vmul.f32 %v949, %v884
          %v951 = vmul.f32 %v949, %v885
          %954 = vrot.lane.b32.xlu0 %v950, 123
          %v955 = vpop.permute.xlu0 %954
          %956 = vrot.lane.b32.xlu0 %v951, 123
          %v957 = vpop.permute.xlu0 %956
          %v960 = vadd.f32 %v946, %v955
          %v961 = vadd.f32 %v947, %v957
          %s962 = sld [smem:[#allocation5 + $0x1b]]
          %v963 = vstv %s962
          %v964 = vmul.f32 %v963, %v884
          %v965 = vmul.f32 %v963, %v885
          %968 = vrot.lane.b32.xlu0 %v964, 122
          %v969 = vpop.permute.xlu0 %968
          %970 = vrot.lane.b32.xlu0 %v965, 122
          %v971 = vpop.permute.xlu0 %970
          %v974 = vadd.f32 %v960, %v969
          %v975 = vadd.f32 %v961, %v971
          %v976 = vld [vmem:[#allocation4 + $0x4] sm:$0xff]
          %v977 = vld [vmem:[#allocation4 + $0xc] sm:$0xff]
          %s978 = sld [smem:[#allocation5 + $0x1c]]
          %v979 = vstv %s978
          %v980 = vmul.f32 %v979, %v976
          %v981 = vmul.f32 %v979, %v977
          %v982 = vadd.f32 %v974, %v980
          %v983 = vadd.f32 %v975, %v981
          %s984 = sld [smem:[#allocation5 + $0x1d]]
          %v985 = vstv %s984
          %v986 = vmul.f32 %v985, %v976
          %v987 = vmul.f32 %v985, %v977
          %990 = vrot.lane.b32.xlu0 %v986, 127
          %v991 = vpop.permute.xlu0 %990
          %992 = vrot.lane.b32.xlu0 %v987, 127
          %v993 = vpop.permute.xlu0 %992
          %v996 = vadd.f32 %v982, %v991
          %v997 = vadd.f32 %v983, %v993
          %s998 = sld [smem:[#allocation5 + $0x1e]]
          %v999 = vstv %s998
          %v1000 = vmul.f32 %v999, %v976
          %v1001 = vmul.f32 %v999, %v977
          %1004 = vrot.lane.b32.xlu0 %v1000, 126
          %v1005 = vpop.permute.xlu0 %1004
          %1006 = vrot.lane.b32.xlu0 %v1001, 126
          %v1007 = vpop.permute.xlu0 %1006
          %v1010 = vadd.f32 %v996, %v1005
          %v1011 = vadd.f32 %v997, %v1007
          %s1012 = sld [smem:[#allocation5 + $0x1f]]
          %v1013 = vstv %s1012
          %v1014 = vmul.f32 %v1013, %v976
          %v1015 = vmul.f32 %v1013, %v977
          %1018 = vrot.lane.b32.xlu0 %v1014, 125
          %v1019 = vpop.permute.xlu0 %1018
          %1020 = vrot.lane.b32.xlu0 %v1015, 125
          %v1021 = vpop.permute.xlu0 %1020
          %v1024 = vadd.f32 %v1010, %v1019
          %v1025 = vadd.f32 %v1011, %v1021
          %s1026 = sld [smem:[#allocation5 + $0x20]]
          %v1027 = vstv %s1026
          %v1028 = vmul.f32 %v1027, %v976
          %v1029 = vmul.f32 %v1027, %v977
          %1032 = vrot.lane.b32.xlu0 %v1028, 124
          %v1033 = vpop.permute.xlu0 %1032
          %1034 = vrot.lane.b32.xlu0 %v1029, 124
          %v1035 = vpop.permute.xlu0 %1034
          %v1038 = vadd.f32 %v1024, %v1033
          %v1039 = vadd.f32 %v1025, %v1035
          %s1040 = sld [smem:[#allocation5 + $0x21]]
          %v1041 = vstv %s1040
          %v1042 = vmul.f32 %v1041, %v976
          %v1043 = vmul.f32 %v1041, %v977
          %1046 = vrot.lane.b32.xlu0 %v1042, 123
          %v1047 = vpop.permute.xlu0 %1046
          %1048 = vrot.lane.b32.xlu0 %v1043, 123
          %v1049 = vpop.permute.xlu0 %1048
          %v1052 = vadd.f32 %v1038, %v1047
          %v1053 = vadd.f32 %v1039, %v1049
          %s1054 = sld [smem:[#allocation5 + $0x22]]
          %v1055 = vstv %s1054
          %v1056 = vmul.f32 %v1055, %v976
          %v1057 = vmul.f32 %v1055, %v977
          %1060 = vrot.lane.b32.xlu0 %v1056, 122
          %v1061 = vpop.permute.xlu0 %1060
          %1062 = vrot.lane.b32.xlu0 %v1057, 122
          %v1063 = vpop.permute.xlu0 %1062
          %v1066 = vadd.f32 %v1052, %v1061
          %v1067 = vadd.f32 %v1053, %v1063
          %v1068 = vld [vmem:[#allocation4 + $0x5] sm:$0xff]
          %v1069 = vld [vmem:[#allocation4 + $0xd] sm:$0xff]
          %s1070 = sld [smem:[#allocation5 + $0x23]]
          %v1071 = vstv %s1070
          %v1072 = vmul.f32 %v1071, %v1068
          %v1073 = vmul.f32 %v1071, %v1069
          %v1074 = vadd.f32 %v1066, %v1072
          %v1075 = vadd.f32 %v1067, %v1073
          %s1076 = sld [smem:[#allocation5 + $0x24]]
          %v1077 = vstv %s1076
          %v1078 = vmul.f32 %v1077, %v1068
          %v1079 = vmul.f32 %v1077, %v1069
          %1082 = vrot.lane.b32.xlu0 %v1078, 127
          %v1083 = vpop.permute.xlu0 %1082
          %1084 = vrot.lane.b32.xlu0 %v1079, 127
          %v1085 = vpop.permute.xlu0 %1084
          %v1088 = vadd.f32 %v1074, %v1083
          %v1089 = vadd.f32 %v1075, %v1085
          %s1090 = sld [smem:[#allocation5 + $0x25]]
          %v1091 = vstv %s1090
          %v1092 = vmul.f32 %v1091, %v1068
          %v1093 = vmul.f32 %v1091, %v1069
          %1096 = vrot.lane.b32.xlu0 %v1092, 126
          %v1097 = vpop.permute.xlu0 %1096
          %1098 = vrot.lane.b32.xlu0 %v1093, 126
          %v1099 = vpop.permute.xlu0 %1098
          %v1102 = vadd.f32 %v1088, %v1097
          %v1103 = vadd.f32 %v1089, %v1099
          %s1104 = sld [smem:[#allocation5 + $0x26]]
          %v1105 = vstv %s1104
          %v1106 = vmul.f32 %v1105, %v1068
          %v1107 = vmul.f32 %v1105, %v1069
          %1110 = vrot.lane.b32.xlu0 %v1106, 125
          %v1111 = vpop.permute.xlu0 %1110
          %1112 = vrot.lane.b32.xlu0 %v1107, 125
          %v1113 = vpop.permute.xlu0 %1112
          %v1116 = vadd.f32 %v1102, %v1111
          %v1117 = vadd.f32 %v1103, %v1113
          %s1118 = sld [smem:[#allocation5 + $0x27]]
          %v1119 = vstv %s1118
          %v1120 = vmul.f32 %v1119, %v1068
          %v1121 = vmul.f32 %v1119, %v1069
          %1124 = vrot.lane.b32.xlu0 %v1120, 124
          %v1125 = vpop.permute.xlu0 %1124
          %1126 = vrot.lane.b32.xlu0 %v1121, 124
          %v1127 = vpop.permute.xlu0 %1126
          %v1130 = vadd.f32 %v1116, %v1125
          %v1131 = vadd.f32 %v1117, %v1127
          %s1132 = sld [smem:[#allocation5 + $0x28]]
          %v1133 = vstv %s1132
          %v1134 = vmul.f32 %v1133, %v1068
          %v1135 = vmul.f32 %v1133, %v1069
          %1138 = vrot.lane.b32.xlu0 %v1134, 123
          %v1139 = vpop.permute.xlu0 %1138
          %1140 = vrot.lane.b32.xlu0 %v1135, 123
          %v1141 = vpop.permute.xlu0 %1140
          %v1144 = vadd.f32 %v1130, %v1139
          %v1145 = vadd.f32 %v1131, %v1141
          %s1146 = sld [smem:[#allocation5 + $0x29]]
          %v1147 = vstv %s1146
          %v1148 = vmul.f32 %v1147, %v1068
          %v1149 = vmul.f32 %v1147, %v1069
          %1152 = vrot.lane.b32.xlu0 %v1148, 122
          %v1153 = vpop.permute.xlu0 %1152
          %1154 = vrot.lane.b32.xlu0 %v1149, 122
          %v1155 = vpop.permute.xlu0 %1154
          %v1158 = vadd.f32 %v1144, %v1153
          %v1159 = vadd.f32 %v1145, %v1155
          %v1160 = vld [vmem:[#allocation4 + $0x6] sm:$0xff]
          %v1161 = vld [vmem:[#allocation4 + $0xe] sm:$0xff]
          %s1162 = sld [smem:[#allocation5 + $0x2a]]
          %v1163 = vstv %s1162
          %v1164 = vmul.f32 %v1163, %v1160
          %v1165 = vmul.f32 %v1163, %v1161
          %v1166 = vadd.f32 %v1158, %v1164
          %v1167 = vadd.f32 %v1159, %v1165
          %s1168 = sld [smem:[#allocation5 + $0x2b]]
          %v1169 = vstv %s1168
          %v1170 = vmul.f32 %v1169, %v1160
          %v1171 = vmul.f32 %v1169, %v1161
          %1174 = vrot.lane.b32.xlu0 %v1170, 127
          %v1175 = vpop.permute.xlu0 %1174
          %1176 = vrot.lane.b32.xlu0 %v1171, 127
          %v1177 = vpop.permute.xlu0 %1176
          %v1180 = vadd.f32 %v1166, %v1175
          %v1181 = vadd.f32 %v1167, %v1177
          %s1182 = sld [smem:[#allocation5 + $0x2c]]
          %v1183 = vstv %s1182
          %v1184 = vmul.f32 %v1183, %v1160
          %v1185 = vmul.f32 %v1183, %v1161
          %1188 = vrot.lane.b32.xlu0 %v1184, 126
          %v1189 = vpop.permute.xlu0 %1188
          %1190 = vrot.lane.b32.xlu0 %v1185, 126
          %v1191 = vpop.permute.xlu0 %1190
          %v1194 = vadd.f32 %v1180, %v1189
          %v1195 = vadd.f32 %v1181, %v1191
          %s1196 = sld [smem:[#allocation5 + $0x2d]]
          %v1197 = vstv %s1196
          %v1198 = vmul.f32 %v1197, %v1160
          %v1199 = vmul.f32 %v1197, %v1161
          %1202 = vrot.lane.b32.xlu0 %v1198, 125
          %v1203 = vpop.permute.xlu0 %1202
          %1204 = vrot.lane.b32.xlu0 %v1199, 125
          %v1205 = vpop.permute.xlu0 %1204
          %v1208 = vadd.f32 %v1194, %v1203
          %v1209 = vadd.f32 %v1195, %v1205
          %s1210 = sld [smem:[#allocation5 + $0x2e]]
          %v1211 = vstv %s1210
          %v1212 = vmul.f32 %v1211, %v1160
          %v1213 = vmul.f32 %v1211, %v1161
          %1216 = vrot.lane.b32.xlu0 %v1212, 124
          %v1217 = vpop.permute.xlu0 %1216
          %1218 = vrot.lane.b32.xlu0 %v1213, 124
          %v1219 = vpop.permute.xlu0 %1218
          %v1222 = vadd.f32 %v1208, %v1217
          %v1223 = vadd.f32 %v1209, %v1219
          %s1224 = sld [smem:[#allocation5 + $0x2f]]
          %v1225 = vstv %s1224
          %v1226 = vmul.f32 %v1225, %v1160
          %v1227 = vmul.f32 %v1225, %v1161
          %1230 = vrot.lane.b32.xlu0 %v1226, 123
          %v1231 = vpop.permute.xlu0 %1230
          %1232 = vrot.lane.b32.xlu0 %v1227, 123
          %v1233 = vpop.permute.xlu0 %1232
          %v1236 = vadd.f32 %v1222, %v1231
          %v1237 = vadd.f32 %v1223, %v1233
          %s1238 = sld [smem:[#allocation5 + $0x30]]
          %v1239 = vstv %s1238
          %v1240 = vmul.f32 %v1239, %v1160
          %v1241 = vmul.f32 %v1239, %v1161
          %1244 = vrot.lane.b32.xlu0 %v1240, 122
          %v1245 = vpop.permute.xlu0 %1244
          %1246 = vrot.lane.b32.xlu0 %v1241, 122
          %v1247 = vpop.permute.xlu0 %1246
          %v1250 = vadd.f32 %v1236, %v1245
          %v1251 = vadd.f32 %v1237, %v1247
          %v1252 = vld [vmem:[%s308] sm:$0xff]
          %v1253 = vld [vmem:[%s308 + $0x8] sm:$0xff]
          %s1254 = sld [smem:[#allocation5 + $0x31]]
          %v1255 = vstv %s1254
          %v1256 = vmul.f32 %v1255, %v1252
          %v1257 = vmul.f32 %v1255, %v1253
          %v1258 = vadd.f32 %v1250, %v1256
          %v1259 = vadd.f32 %v1251, %v1257
          %s1260 = sld [smem:[#allocation5 + $0x32]]
          %v1261 = vstv %s1260
          %v1262 = vmul.f32 %v1261, %v1252
          %v1263 = vmul.f32 %v1261, %v1253
          %1266 = vrot.lane.b32.xlu0 %v1262, 127
          %v1267 = vpop.permute.xlu0 %1266
          %1268 = vrot.lane.b32.xlu0 %v1263, 127
          %v1269 = vpop.permute.xlu0 %1268
          %v1272 = vadd.f32 %v1258, %v1267
          %v1273 = vadd.f32 %v1259, %v1269
          %s1274 = sld [smem:[#allocation5 + $0x33]]
          %v1275 = vstv %s1274
          %v1276 = vmul.f32 %v1275, %v1252
          %v1277 = vmul.f32 %v1275, %v1253
          %1280 = vrot.lane.b32.xlu0 %v1276, 126
          %v1281 = vpop.permute.xlu0 %1280
          %1282 = vrot.lane.b32.xlu0 %v1277, 126
          %v1283 = vpop.permute.xlu0 %1282
          %v1286 = vadd.f32 %v1272, %v1281
          %v1287 = vadd.f32 %v1273, %v1283
          %s1288 = sld [smem:[#allocation5 + $0x34]]
          %v1289 = vstv %s1288
          %v1290 = vmul.f32 %v1289, %v1252
          %v1291 = vmul.f32 %v1289, %v1253
          %1294 = vrot.lane.b32.xlu0 %v1290, 125
          %v1295 = vpop.permute.xlu0 %1294
          %1296 = vrot.lane.b32.xlu0 %v1291, 125
          %v1297 = vpop.permute.xlu0 %1296
          %v1300 = vadd.f32 %v1286, %v1295
          %v1301 = vadd.f32 %v1287, %v1297
          %s1302 = sld [smem:[#allocation5 + $0x35]]
          %v1303 = vstv %s1302
          %v1304 = vmul.f32 %v1303, %v1252
          %v1305 = vmul.f32 %v1303, %v1253
          %1308 = vrot.lane.b32.xlu0 %v1304, 124
          %v1309 = vpop.permute.xlu0 %1308
          %1310 = vrot.lane.b32.xlu0 %v1305, 124
          %v1311 = vpop.permute.xlu0 %1310
          %v1314 = vadd.f32 %v1300, %v1309
          %v1315 = vadd.f32 %v1301, %v1311
          %s1316 = sld [smem:[#allocation5 + $0x36]]
          %v1317 = vstv %s1316
          %v1318 = vmul.f32 %v1317, %v1252
          %v1319 = vmul.f32 %v1317, %v1253
          %1322 = vrot.lane.b32.xlu0 %v1318, 123
          %v1323 = vpop.permute.xlu0 %1322
          %1324 = vrot.lane.b32.xlu0 %v1319, 123
          %v1325 = vpop.permute.xlu0 %1324
          %v1328 = vadd.f32 %v1314, %v1323
          %v1329 = vadd.f32 %v1315, %v1325
          %s1330 = sld [smem:[#allocation5 + $0x37]]
          %v1331 = vstv %s1330
          %v1332 = vmul.f32 %v1331, %v1252
          %v1333 = vmul.f32 %v1331, %v1253
          %1336 = vrot.lane.b32.xlu0 %v1332, 122
          %v1337 = vpop.permute.xlu0 %1336
          %1338 = vrot.lane.b32.xlu0 %v1333, 122
          %v1339 = vpop.permute.xlu0 %1338
          %v1342 = vadd.f32 %v1328, %v1337
          %v1343 = vadd.f32 %v1329, %v1339
          %v1344 = vld [vmem:[%s308 + $0x1] sm:$0xff]
          %v1345 = vld [vmem:[%s308 + $0x9] sm:$0xff]
          %s1346 = sld [smem:[#allocation5 + $0x38]]
          %v1347 = vstv %s1346
          %v1348 = vmul.f32 %v1347, %v1344
          %v1349 = vmul.f32 %v1347, %v1345
          %v1350 = vadd.f32 %v1342, %v1348
          %v1351 = vadd.f32 %v1343, %v1349
          %s1352 = sld [smem:[#allocation5 + $0x39]]
          %v1353 = vstv %s1352
          %v1354 = vmul.f32 %v1353, %v1344
          %v1355 = vmul.f32 %v1353, %v1345
          %1358 = vrot.lane.b32.xlu0 %v1354, 127
          %v1359 = vpop.permute.xlu0 %1358
          %1360 = vrot.lane.b32.xlu0 %v1355, 127
          %v1361 = vpop.permute.xlu0 %1360
          %v1364 = vadd.f32 %v1350, %v1359
          %v1365 = vadd.f32 %v1351, %v1361
          %s1366 = sld [smem:[#allocation5 + $0x3a]]
          %v1367 = vstv %s1366
          %v1368 = vmul.f32 %v1367, %v1344
          %v1369 = vmul.f32 %v1367, %v1345
          %1372 = vrot.lane.b32.xlu0 %v1368, 126
          %v1373 = vpop.permute.xlu0 %1372
          %1374 = vrot.lane.b32.xlu0 %v1369, 126
          %v1375 = vpop.permute.xlu0 %1374
          %v1378 = vadd.f32 %v1364, %v1373
          %v1379 = vadd.f32 %v1365, %v1375
          %s1380 = sld [smem:[#allocation5 + $0x3b]]
          %v1381 = vstv %s1380
          %v1382 = vmul.f32 %v1381, %v1344
          %v1383 = vmul.f32 %v1381, %v1345
          %1386 = vrot.lane.b32.xlu0 %v1382, 125
          %v1387 = vpop.permute.xlu0 %1386
          %1388 = vrot.lane.b32.xlu0 %v1383, 125
          %v1389 = vpop.permute.xlu0 %1388
          %v1392 = vadd.f32 %v1378, %v1387
          %v1393 = vadd.f32 %v1379, %v1389
          %s1394 = sld [smem:[#allocation5 + $0x3c]]
          %v1395 = vstv %s1394
          %v1396 = vmul.f32 %v1395, %v1344
          %v1397 = vmul.f32 %v1395, %v1345
          %1400 = vrot.lane.b32.xlu0 %v1396, 124
          %v1401 = vpop.permute.xlu0 %1400
          %1402 = vrot.lane.b32.xlu0 %v1397, 124
          %v1403 = vpop.permute.xlu0 %1402
          %v1406 = vadd.f32 %v1392, %v1401
          %v1407 = vadd.f32 %v1393, %v1403
          %s1408 = sld [smem:[#allocation5 + $0x3d]]
          %v1409 = vstv %s1408
          %v1410 = vmul.f32 %v1409, %v1344
          %v1411 = vmul.f32 %v1409, %v1345
          %1414 = vrot.lane.b32.xlu0 %v1410, 123
          %v1415 = vpop.permute.xlu0 %1414
          %1416 = vrot.lane.b32.xlu0 %v1411, 123
          %v1417 = vpop.permute.xlu0 %1416
          %v1420 = vadd.f32 %v1406, %v1415
          %v1421 = vadd.f32 %v1407, %v1417
          %s1422 = sld [smem:[#allocation5 + $0x3e]]
          %v1423 = vstv %s1422
          %v1424 = vmul.f32 %v1423, %v1344
          %v1425 = vmul.f32 %v1423, %v1345
          %1428 = vrot.lane.b32.xlu0 %v1424, 122
          %v1429 = vpop.permute.xlu0 %1428
          %1430 = vrot.lane.b32.xlu0 %v1425, 122
          %v1431 = vpop.permute.xlu0 %1430
          %v1434 = vadd.f32 %v1420, %v1429
          %v1435 = vadd.f32 %v1421, %v1431
          %v1436 = vld [vmem:[%s308 + $0x2] sm:$0xff]
          %v1437 = vld [vmem:[%s308 + $0xa] sm:$0xff]
          %s1438 = sld [smem:[#allocation5 + $0x3f]]
          %v1439 = vstv %s1438
          %v1440 = vmul.f32 %v1439, %v1436
          %v1441 = vmul.f32 %v1439, %v1437
          %v1442 = vadd.f32 %v1434, %v1440
          %v1443 = vadd.f32 %v1435, %v1441
          %s1444 = sld [smem:[#allocation5 + $0x40]]
          %v1445 = vstv %s1444
          %v1446 = vmul.f32 %v1445, %v1436
          %v1447 = vmul.f32 %v1445, %v1437
          %1450 = vrot.lane.b32.xlu0 %v1446, 127
          %v1451 = vpop.permute.xlu0 %1450
          %1452 = vrot.lane.b32.xlu0 %v1447, 127
          %v1453 = vpop.permute.xlu0 %1452
          %v1456 = vadd.f32 %v1442, %v1451
          %v1457 = vadd.f32 %v1443, %v1453
          %s1458 = sld [smem:[#allocation5 + $0x41]]
          %v1459 = vstv %s1458
          %v1460 = vmul.f32 %v1459, %v1436
          %v1461 = vmul.f32 %v1459, %v1437
          %1464 = vrot.lane.b32.xlu0 %v1460, 126
          %v1465 = vpop.permute.xlu0 %1464
          %1466 = vrot.lane.b32.xlu0 %v1461, 126
          %v1467 = vpop.permute.xlu0 %1466
          %v1470 = vadd.f32 %v1456, %v1465
          %v1471 = vadd.f32 %v1457, %v1467
          %s1472 = sld [smem:[#allocation5 + $0x42]]
          %v1473 = vstv %s1472
          %v1474 = vmul.f32 %v1473, %v1436
          %v1475 = vmul.f32 %v1473, %v1437
          %1478 = vrot.lane.b32.xlu0 %v1474, 125
          %v1479 = vpop.permute.xlu0 %1478
          %1480 = vrot.lane.b32.xlu0 %v1475, 125
          %v1481 = vpop.permute.xlu0 %1480
          %v1484 = vadd.f32 %v1470, %v1479
          %v1485 = vadd.f32 %v1471, %v1481
          %s1486 = sld [smem:[#allocation5 + $0x43]]
          %v1487 = vstv %s1486
          %v1488 = vmul.f32 %v1487, %v1436
          %v1489 = vmul.f32 %v1487, %v1437
          %1492 = vrot.lane.b32.xlu0 %v1488, 124
          %v1493 = vpop.permute.xlu0 %1492
          %1494 = vrot.lane.b32.xlu0 %v1489, 124
          %v1495 = vpop.permute.xlu0 %1494
          %v1498 = vadd.f32 %v1484, %v1493
          %v1499 = vadd.f32 %v1485, %v1495
          %s1500 = sld [smem:[#allocation5 + $0x44]]
          %v1501 = vstv %s1500
          %v1502 = vmul.f32 %v1501, %v1436
          %v1503 = vmul.f32 %v1501, %v1437
          %1506 = vrot.lane.b32.xlu0 %v1502, 123
          %v1507 = vpop.permute.xlu0 %1506
          %1508 = vrot.lane.b32.xlu0 %v1503, 123
          %v1509 = vpop.permute.xlu0 %1508
          %v1512 = vadd.f32 %v1498, %v1507
          %v1513 = vadd.f32 %v1499, %v1509
          %s1514 = sld [smem:[#allocation5 + $0x45]]
          %v1515 = vstv %s1514
          %v1516 = vmul.f32 %v1515, %v1436
          %v1517 = vmul.f32 %v1515, %v1437
          %1520 = vrot.lane.b32.xlu0 %v1516, 122
          %v1521 = vpop.permute.xlu0 %1520
          %1522 = vrot.lane.b32.xlu0 %v1517, 122
          %v1523 = vpop.permute.xlu0 %1522
          %v1526 = vadd.f32 %v1512, %v1521
          %v1527 = vadd.f32 %v1513, %v1523
          %v1528 = vld [vmem:[%s308 + $0x3] sm:$0xff]
          %v1529 = vld [vmem:[%s308 + $0xb] sm:$0xff]
          %s1530 = sld [smem:[#allocation5 + $0x46]]
          %v1531 = vstv %s1530
          %v1532 = vmul.f32 %v1531, %v1528
          %v1533 = vmul.f32 %v1531, %v1529
          %v1534 = vadd.f32 %v1526, %v1532
          %v1535 = vadd.f32 %v1527, %v1533
          %s1536 = sld [smem:[#allocation5 + $0x47]]
          %v1537 = vstv %s1536
          %v1538 = vmul.f32 %v1537, %v1528
          %v1539 = vmul.f32 %v1537, %v1529
          %1542 = vrot.lane.b32.xlu0 %v1538, 127
          %v1543 = vpop.permute.xlu0 %1542
          %1544 = vrot.lane.b32.xlu0 %v1539, 127
          %v1545 = vpop.permute.xlu0 %1544
          %v1548 = vadd.f32 %v1534, %v1543
          %v1549 = vadd.f32 %v1535, %v1545
          %s1550 = sld [smem:[#allocation5 + $0x48]]
          %v1551 = vstv %s1550
          %v1552 = vmul.f32 %v1551, %v1528
          %v1553 = vmul.f32 %v1551, %v1529
          %1556 = vrot.lane.b32.xlu0 %v1552, 126
          %v1557 = vpop.permute.xlu0 %1556
          %1558 = vrot.lane.b32.xlu0 %v1553, 126
          %v1559 = vpop.permute.xlu0 %1558
          %v1562 = vadd.f32 %v1548, %v1557
          %v1563 = vadd.f32 %v1549, %v1559
          %s1564 = sld [smem:[#allocation5 + $0x49]]
          %v1565 = vstv %s1564
          %v1566 = vmul.f32 %v1565, %v1528
          %v1567 = vmul.f32 %v1565, %v1529
          %1570 = vrot.lane.b32.xlu0 %v1566, 125
          %v1571 = vpop.permute.xlu0 %1570
          %1572 = vrot.lane.b32.xlu0 %v1567, 125
          %v1573 = vpop.permute.xlu0 %1572
          %v1576 = vadd.f32 %v1562, %v1571
          %v1577 = vadd.f32 %v1563, %v1573
          %s1578 = sld [smem:[#allocation5 + $0x4a]]
          %v1579 = vstv %s1578
          %v1580 = vmul.f32 %v1579, %v1528
          %v1581 = vmul.f32 %v1579, %v1529
          %1584 = vrot.lane.b32.xlu0 %v1580, 124
          %v1585 = vpop.permute.xlu0 %1584
          %1586 = vrot.lane.b32.xlu0 %v1581, 124
          %v1587 = vpop.permute.xlu0 %1586
          %v1590 = vadd.f32 %v1576, %v1585
          %v1591 = vadd.f32 %v1577, %v1587
          %s1592 = sld [smem:[#allocation5 + $0x4b]]
          %v1593 = vstv %s1592
          %v1594 = vmul.f32 %v1593, %v1528
          %v1595 = vmul.f32 %v1593, %v1529
          %1598 = vrot.lane.b32.xlu0 %v1594, 123
          %v1599 = vpop.permute.xlu0 %1598
          %1600 = vrot.lane.b32.xlu0 %v1595, 123
          %v1601 = vpop.permute.xlu0 %1600
          %v1604 = vadd.f32 %v1590, %v1599
          %v1605 = vadd.f32 %v1591, %v1601
          %s1606 = sld [smem:[#allocation5 + $0x4c]]
          %v1607 = vstv %s1606
          %v1608 = vmul.f32 %v1607, %v1528
          %v1609 = vmul.f32 %v1607, %v1529
          %1612 = vrot.lane.b32.xlu0 %v1608, 122
          %v1613 = vpop.permute.xlu0 %1612
          %1614 = vrot.lane.b32.xlu0 %v1609, 122
          %v1615 = vpop.permute.xlu0 %1614
          %v1618 = vadd.f32 %v1604, %v1613
          %v1619 = vadd.f32 %v1605, %v1615
          %v1620 = vld [vmem:[%s308 + $0x4] sm:$0xff]
          %v1621 = vld [vmem:[%s308 + $0xc] sm:$0xff]
          %s1622 = sld [smem:[#allocation5 + $0x4d]]
          %v1623 = vstv %s1622
          %v1624 = vmul.f32 %v1623, %v1620
          %v1625 = vmul.f32 %v1623, %v1621
          %v1626 = vadd.f32 %v1618, %v1624
          %v1627 = vadd.f32 %v1619, %v1625
          %s1628 = sld [smem:[#allocation5 + $0x4e]]
          %v1629 = vstv %s1628
          %v1630 = vmul.f32 %v1629, %v1620
          %v1631 = vmul.f32 %v1629, %v1621
          %1634 = vrot.lane.b32.xlu0 %v1630, 127
          %v1635 = vpop.permute.xlu0 %1634
          %1636 = vrot.lane.b32.xlu0 %v1631, 127
          %v1637 = vpop.permute.xlu0 %1636
          %v1640 = vadd.f32 %v1626, %v1635
          %v1641 = vadd.f32 %v1627, %v1637
          %s1642 = sld [smem:[#allocation5 + $0x4f]]
          %v1643 = vstv %s1642
          %v1644 = vmul.f32 %v1643, %v1620
          %v1645 = vmul.f32 %v1643, %v1621
          %1648 = vrot.lane.b32.xlu0 %v1644, 126
          %v1649 = vpop.permute.xlu0 %1648
          %1650 = vrot.lane.b32.xlu0 %v1645, 126
          %v1651 = vpop.permute.xlu0 %1650
          %v1654 = vadd.f32 %v1640, %v1649
          %v1655 = vadd.f32 %v1641, %v1651
          %s1656 = sld [smem:[#allocation5 + $0x50]]
          %v1657 = vstv %s1656
          %v1658 = vmul.f32 %v1657, %v1620
          %v1659 = vmul.f32 %v1657, %v1621
          %1662 = vrot.lane.b32.xlu0 %v1658, 125
          %v1663 = vpop.permute.xlu0 %1662
          %1664 = vrot.lane.b32.xlu0 %v1659, 125
          %v1665 = vpop.permute.xlu0 %1664
          %v1668 = vadd.f32 %v1654, %v1663
          %v1669 = vadd.f32 %v1655, %v1665
          %s1670 = sld [smem:[#allocation5 + $0x51]]
          %v1671 = vstv %s1670
          %v1672 = vmul.f32 %v1671, %v1620
          %v1673 = vmul.f32 %v1671, %v1621
          %1676 = vrot.lane.b32.xlu0 %v1672, 124
          %v1677 = vpop.permute.xlu0 %1676
          %1678 = vrot.lane.b32.xlu0 %v1673, 124
          %v1679 = vpop.permute.xlu0 %1678
          %v1682 = vadd.f32 %v1668, %v1677
          %v1683 = vadd.f32 %v1669, %v1679
          %s1684 = sld [smem:[#allocation5 + $0x52]]
          %v1685 = vstv %s1684
          %v1686 = vmul.f32 %v1685, %v1620
          %v1687 = vmul.f32 %v1685, %v1621
          %1690 = vrot.lane.b32.xlu0 %v1686, 123
          %v1691 = vpop.permute.xlu0 %1690
          %1692 = vrot.lane.b32.xlu0 %v1687, 123
          %v1693 = vpop.permute.xlu0 %1692
          %v1696 = vadd.f32 %v1682, %v1691
          %v1697 = vadd.f32 %v1683, %v1693
          %s1698 = sld [smem:[#allocation5 + $0x53]]
          %v1699 = vstv %s1698
          %v1700 = vmul.f32 %v1699, %v1620
          %v1701 = vmul.f32 %v1699, %v1621
          %1704 = vrot.lane.b32.xlu0 %v1700, 122
          %v1705 = vpop.permute.xlu0 %1704
          %1706 = vrot.lane.b32.xlu0 %v1701, 122
          %v1707 = vpop.permute.xlu0 %1706
          %v1710 = vadd.f32 %v1696, %v1705
          %v1711 = vadd.f32 %v1697, %v1707
          %v1712 = vld [vmem:[%s308 + $0x5] sm:$0xff]
          %v1713 = vld [vmem:[%s308 + $0xd] sm:$0xff]
          %s1714 = sld [smem:[#allocation5 + $0x54]]
          %v1715 = vstv %s1714
          %v1716 = vmul.f32 %v1715, %v1712
          %v1717 = vmul.f32 %v1715, %v1713
          %v1718 = vadd.f32 %v1710, %v1716
          %v1719 = vadd.f32 %v1711, %v1717
          %s1720 = sld [smem:[#allocation5 + $0x55]]
          %v1721 = vstv %s1720
          %v1722 = vmul.f32 %v1721, %v1712
          %v1723 = vmul.f32 %v1721, %v1713
          %1726 = vrot.lane.b32.xlu0 %v1722, 127
          %v1727 = vpop.permute.xlu0 %1726
          %1728 = vrot.lane.b32.xlu0 %v1723, 127
          %v1729 = vpop.permute.xlu0 %1728
          %v1732 = vadd.f32 %v1718, %v1727
          %v1733 = vadd.f32 %v1719, %v1729
          %s1734 = sld [smem:[#allocation5 + $0x56]]
          %v1735 = vstv %s1734
          %v1736 = vmul.f32 %v1735, %v1712
          %v1737 = vmul.f32 %v1735, %v1713
          %1740 = vrot.lane.b32.xlu0 %v1736, 126
          %v1741 = vpop.permute.xlu0 %1740
          %1742 = vrot.lane.b32.xlu0 %v1737, 126
          %v1743 = vpop.permute.xlu0 %1742
          %v1746 = vadd.f32 %v1732, %v1741
          %v1747 = vadd.f32 %v1733, %v1743
          %s1748 = sld [smem:[#allocation5 + $0x57]]
          %v1749 = vstv %s1748
          %v1750 = vmul.f32 %v1749, %v1712
          %v1751 = vmul.f32 %v1749, %v1713
          %1754 = vrot.lane.b32.xlu0 %v1750, 125
          %v1755 = vpop.permute.xlu0 %1754
          %1756 = vrot.lane.b32.xlu0 %v1751, 125
          %v1757 = vpop.permute.xlu0 %1756
          %v1760 = vadd.f32 %v1746, %v1755
          %v1761 = vadd.f32 %v1747, %v1757
          %s1762 = sld [smem:[#allocation5 + $0x58]]
          %v1763 = vstv %s1762
          %v1764 = vmul.f32 %v1763, %v1712
          %v1765 = vmul.f32 %v1763, %v1713
          %1768 = vrot.lane.b32.xlu0 %v1764, 124
          %v1769 = vpop.permute.xlu0 %1768
          %1770 = vrot.lane.b32.xlu0 %v1765, 124
          %v1771 = vpop.permute.xlu0 %1770
          %v1774 = vadd.f32 %v1760, %v1769
          %v1775 = vadd.f32 %v1761, %v1771
          %s1776 = sld [smem:[#allocation5 + $0x59]]
          %v1777 = vstv %s1776
          %v1778 = vmul.f32 %v1777, %v1712
          %v1779 = vmul.f32 %v1777, %v1713
          %1782 = vrot.lane.b32.xlu0 %v1778, 123
          %v1783 = vpop.permute.xlu0 %1782
          %1784 = vrot.lane.b32.xlu0 %v1779, 123
          %v1785 = vpop.permute.xlu0 %1784
          %v1788 = vadd.f32 %v1774, %v1783
          %v1789 = vadd.f32 %v1775, %v1785
          %s1790 = sld [smem:[#allocation5 + $0x5a]]
          %v1791 = vstv %s1790
          %v1792 = vmul.f32 %v1791, %v1712
          %v1793 = vmul.f32 %v1791, %v1713
          %1796 = vrot.lane.b32.xlu0 %v1792, 122
          %v1797 = vpop.permute.xlu0 %1796
          %1798 = vrot.lane.b32.xlu0 %v1793, 122
          %v1799 = vpop.permute.xlu0 %1798
          %v1802 = vadd.f32 %v1788, %v1797
          %v1803 = vadd.f32 %v1789, %v1799
          %v1804 = vld [vmem:[%s308 + $0x6] sm:$0xff]
          %v1805 = vld [vmem:[%s308 + $0xe] sm:$0xff]
          %s1806 = sld [smem:[#allocation5 + $0x5b]]
          %v1807 = vstv %s1806
          %v1808 = vmul.f32 %v1807, %v1804
          %v1809 = vmul.f32 %v1807, %v1805
          %v1810 = vadd.f32 %v1802, %v1808
          %v1811 = vadd.f32 %v1803, %v1809
          %s1812 = sld [smem:[#allocation5 + $0x5c]]
          %v1813 = vstv %s1812
          %v1814 = vmul.f32 %v1813, %v1804
          %v1815 = vmul.f32 %v1813, %v1805
          %1818 = vrot.lane.b32.xlu0 %v1814, 127
          %v1819 = vpop.permute.xlu0 %1818
          %1820 = vrot.lane.b32.xlu0 %v1815, 127
          %v1821 = vpop.permute.xlu0 %1820
          %v1824 = vadd.f32 %v1810, %v1819
          %v1825 = vadd.f32 %v1811, %v1821
          %s1826 = sld [smem:[#allocation5 + $0x5d]]
          %v1827 = vstv %s1826
          %v1828 = vmul.f32 %v1827, %v1804
          %v1829 = vmul.f32 %v1827, %v1805
          %1832 = vrot.lane.b32.xlu0 %v1828, 126
          %v1833 = vpop.permute.xlu0 %1832
          %1834 = vrot.lane.b32.xlu0 %v1829, 126
          %v1835 = vpop.permute.xlu0 %1834
          %v1838 = vadd.f32 %v1824, %v1833
          %v1839 = vadd.f32 %v1825, %v1835
          %s1840 = sld [smem:[#allocation5 + $0x5e]]
          %v1841 = vstv %s1840
          %v1842 = vmul.f32 %v1841, %v1804
          %v1843 = vmul.f32 %v1841, %v1805
          %1846 = vrot.lane.b32.xlu0 %v1842, 125
          %v1847 = vpop.permute.xlu0 %1846
          %1848 = vrot.lane.b32.xlu0 %v1843, 125
          %v1849 = vpop.permute.xlu0 %1848
          %v1852 = vadd.f32 %v1838, %v1847
          %v1853 = vadd.f32 %v1839, %v1849
          %s1854 = sld [smem:[#allocation5 + $0x5f]]
          %v1855 = vstv %s1854
          %v1856 = vmul.f32 %v1855, %v1804
          %v1857 = vmul.f32 %v1855, %v1805
          %1860 = vrot.lane.b32.xlu0 %v1856, 124
          %v1861 = vpop.permute.xlu0 %1860
          %1862 = vrot.lane.b32.xlu0 %v1857, 124
          %v1863 = vpop.permute.xlu0 %1862
          %v1866 = vadd.f32 %v1852, %v1861
          %v1867 = vadd.f32 %v1853, %v1863
          %s1868 = sld [smem:[#allocation5 + $0x60]]
          %v1869 = vstv %s1868
          %v1870 = vmul.f32 %v1869, %v1804
          %v1871 = vmul.f32 %v1869, %v1805
          %1874 = vrot.lane.b32.xlu0 %v1870, 123
          %v1875 = vpop.permute.xlu0 %1874
          %1876 = vrot.lane.b32.xlu0 %v1871, 123
          %v1877 = vpop.permute.xlu0 %1876
          %v1880 = vadd.f32 %v1866, %v1875
          %v1881 = vadd.f32 %v1867, %v1877
          %s1882 = sld [smem:[#allocation5 + $0x61]]
          %v1883 = vstv %s1882
          %v1884 = vmul.f32 %v1883, %v1804
          %v1885 = vmul.f32 %v1883, %v1805
          %1888 = vrot.lane.b32.xlu0 %v1884, 122
          %v1889 = vpop.permute.xlu0 %1888
          %1890 = vrot.lane.b32.xlu0 %v1885, 122
          %v1891 = vpop.permute.xlu0 %1890
          %v1894 = vadd.f32 %v1880, %v1889
          %v1895 = vadd.f32 %v1881, %v1891
          %v1896 = vxor.u32 %v1894, 2147483648
          %v1897 = vxor.u32 %v1895, 2147483648
          %v1898 = vmul.f32 %v1896, 1.442695
          %v1899 = vpow.pop %v1898
          %v1900 = vmul.f32 %v1897, 1.442695
          %v1901 = vpow.pop %v1900
          %v1902 = vadd.f32 %v1899, 1.0
          %v1903 = vadd.f32 %v1901, 1.0
          %v1904 = vrcp.pop %v1902
          %v1905 = vmul.f32 1.0, %v1904
          %v1906 = vrcp.pop %v1903
          %v1907 = vmul.f32 1.0, %v1906
          %vm1908 = vcmask 130048
          %1909 = vst.msk [vmem:[%s187] sm:$0xff] %vm1908, %v1905
          %1910 = vst.msk [vmem:[%s187 + $0x8] sm:$0xff] %vm1908, %v1907
        $region44: #{tpu_custom_call.1} parent=27 // pred_fallthru
          _
        %s1911 = sand.u32 %s89, 1
        %s1912 = scalar_lea.sflag [#allocation7], %s1911
        %s1913 = sand.u32 %s89, 1
        %s1914 = smul.addr %s1913, 16
        %s1915 = scalar_lea.vmem [#allocation10], %s1914
        // Predicated region
        $region45: #{tpu_custom_call.1} parent=27 // pred_check
          %p1916 = pneg %p99
        $region46: #{tpu_custom_call.1} parent=27 // pred_check_branch
          %1918 = sbr.rel (%p1916) target = $region48
        $region47: #{tpu_custom_call.1} parent=27 // pred_region
          %s1920 = ssub.s32 256, 256
          %1921 = vsyncadd %s1912, %s1920
          %s1922 = smul.addr %s24, 2
          %s1923 = smul.addr %s1922, 128
          %s1924 = scalar_lea.hbm %s2, %s1923
          %s1925 = sshll.u32 %s1915, 4
          %s1926 = int_to_ptr.vmem [resolvable:$true] %s1925
          %1931 = dma.vmem_to_hbm [thread:$0]  %s1926, 256, %s1924, %s1912, 128, 128, 8
        $region48: #{tpu_custom_call.1} parent=27 // pred_fallthru
          _
      $region28: #{tpu_custom_call.1} parent=5 // pred_fallthru
        _
      %p1932 = scmp.le.s32.totalorder 2, %s15
      // Predicated region
      $region49: #{tpu_custom_call.1} parent=5 // pred_check
        %p1933 = pneg %p1932
      $region50: #{tpu_custom_call.1} parent=5 // pred_check_branch
        %1935 = sbr.rel (%p1933) target = $region52
      $region51: #{tpu_custom_call.1} parent=5 // pred_region
        %s1936 = ssub.s32 %s15, 2
        // Predicated region
        $region53: #{tpu_custom_call.1} parent=51 // pred_check
          %p1937 = pneg %p105
        $region54: #{tpu_custom_call.1} parent=51 // pred_check_branch
          %1939 = sbr.rel (%p1937) target = $region56
        $region55: #{tpu_custom_call.1} parent=51 // pred_region
          %s1940 = sand.u32 %s90, 1
          %s1941 = scalar_lea.sflag [#allocation7], %s1940
          %s1942 = sand.u32 %s90, 1
          %s1943 = smul.addr %s1942, 16
          %s1944 = scalar_lea.vmem [#allocation10], %s1943
          %1945 = dma.done %s1941, 256
        $region56: #{tpu_custom_call.1} parent=51 // pred_fallthru
          _
      $region52: #{tpu_custom_call.1} parent=5 // pred_fallthru
        _
    $region6: #{tpu_custom_call.1} parent=1 // loop_footer
      %s19 = sadd.s32 1, %s15
    $region7: #{tpu_custom_call.1} parent=1 // loop_footer_branch
      %14 = sbr.rel target = $region3
    $region8: #{tpu_custom_call.1} parent=1 // loop_exit
      _
    %1946 = vsyncpa [#allocation6], 1
    %s1947 = scalar_lea.sflag [#allocation6], 1
    %1948 = vsyncpa %s1947, 1
    %1949 = vsyncpa [#allocation7], 1
    %s1950 = scalar_lea.sflag [#allocation7], 1
    %1951 = vsyncpa %s1950, 1
    %1952 = vsyncpa [#allocation8], 1
    %s1953 = scalar_lea.sflag [#allocation8], 1
    %1954 = vsyncpa %s1953, 1

</llo_original>
